<compile_context>
chip_gen: v7x
topology: tpu7x:2x2x1
jax: 0.10.0
libtpu: 0.0.40
codegen_flags: <defaults>
</compile_context>

<pallas_src>
from functools import partial

import numpy as np
import jax
import jax.numpy as jnp
from jax import lax
from jax.experimental import pallas as pl
from jax.experimental.pallas import tpu as pltpu


def _upsample_conv_kernel(src_ref, dst_ref, x_ref, w_ref, b_ref, o_ref, win_ref, *,
                          k, stride, tile_h, w_out, u, n_groups, flat_out, matmul_dtype):
    """One (batch, h_tile) grid step of nearest-upsample -> reflect-pad -> conv2d.

    src_ref/dst_ref: SMEM (n_h_tiles*n_groups,) int32 run tables: group g of tile t
        reads original row src[t,g] and broadcast-stores it into window rows
        [dst[t,g], dst[t,g]+u).  Tables are built so the LAST writer of every window
        row is the correct one (later groups may overwrite earlier spill).
    x_ref:   VMEM (C_in, H, W_pad)       original rows, W already upsampled+padded
    w_ref:   VMEM (C_out, k*k*C_in)      weights, K ordered as (dy, dx, ci)
    b_ref:   VMEM (C_out, 1)
    o_ref:   VMEM (C_out, tile_h*W_out)  if flat_out else (C_out, tile_h, W_out)
    win_ref: VMEM scratch (C_in, rows_in + u - 1, W_pad)
    """
    t = pl.program_id(1)
    c_in = x_ref.shape[0]
    w_pad = x_ref.shape[2]
    c_out, kk = w_ref.shape

    # 1) Fused H-direction nearest-upsample + reflection pad: one read per unique
    #    source row, broadcast-stored into a u-row window slice.
    goff = t * n_groups
    for g in range(n_groups):                       # static, small unrolled loop
        src = src_ref[goff + g]
        dst = dst_ref[goff + g]
        row = x_ref[:, pl.ds(src, 1), :]            # (C_in, 1, W_pad)
        if u == 1:
            win_ref[:, pl.ds(dst, 1), :] = row
        else:
            win_ref[:, pl.ds(dst, u), :] = jnp.broadcast_to(row, (c_in, u, w_pad))

    # 2) im2col: k*k shifted slabs concatenated along K, flattened to (kk, tile_h*W_out).
    # TODO(synk): build the dx shifts with pltpu.roll (XLU) once non-128-multiple W_pad
    #             lane rolls are validated; direct ref slices keep this path known-good.
    if stride == 1:
        slabs = [win_ref[:, dy:dy + tile_h, dx:dx + w_out]
                 for dy in range(k) for dx in range(k)]
    else:   # strided taps (not exercised by the demo config; value slices are slow here)
        win = win_ref[...]
        slabs = [win[:, dy:dy + (tile_h - 1) * stride + 1:stride,
                        dx:dx + (w_out - 1) * stride + 1:stride]
                 for dy in range(k) for dx in range(k)]
    patches = jnp.concatenate(slabs, axis=0).reshape(kk, tile_h * w_out)
    if matmul_dtype is not None:
        patches = patches.astype(matmul_dtype)      # weights already cast in the wrapper

    # 3) Single MXU contraction -> (C_out, tile_h*W_out), already in output layout.
    acc = lax.dot_general(w_ref[...], patches,
                          dimension_numbers=(((1,), (0,)), ((), ())),
                          preferred_element_type=jnp.float32)
    acc = acc + b_ref[...]                           # bias once, f32

    # 4) Lane-dense store.
    if flat_out:
        o_ref[...] = acc.astype(o_ref.dtype)
    else:
        o_ref[...] = acc.reshape(c_out, tile_h, w_out).astype(o_ref.dtype)


def _build_row_groups(row_src, n_tiles, tile_h, stride, k, u):
    """Per-tile (src_row, dst_window_row) run tables for the in-kernel row gather.

    Each group writes u consecutive window rows from a single source row.  Groups are
    emitted run-by-run left to right; a group may spill into the NEXT run's rows (or
    into the u-1 padding rows at the end), and the later groups overwrite the spill,
    so the final window content is exact.
    """
    rows_in = (tile_h - 1) * stride + k
    per_tile = []
    for t in range(n_tiles):
        base = t * tile_h * stride
        seq = row_src[base:base + rows_in]
        groups = []
        j = 0
        while j < rows_in:
            v = int(seq[j])
            e = j
            while e < rows_in and int(seq[e]) == v:
                e += 1
            s = j
            while True:
                groups.append((v, s))
                if s + u >= e:
                    break
                s += u
            j = e
        per_tile.append(groups)
    n_groups = max(len(g) for g in per_tile)
    src = np.zeros((n_tiles, n_groups), np.int32)
    dst = np.zeros((n_tiles, n_groups), np.int32)
    for t, groups in enumerate(per_tile):
        groups = groups + [groups[-1]] * (n_groups - len(groups))   # idempotent padding
        for g, (v, s) in enumerate(groups):
            src[t, g], dst[t, g] = v, s
    return jnp.asarray(src.reshape(-1)), jnp.asarray(dst.reshape(-1)), n_groups


def _vmem_capacity_bytes():
    try:
        return int(pltpu.get_tpu_info().vmem_capacity_bytes)
    except Exception:
        return 64 * 1024 * 1024            # conservative fallback (v7x per-TC VMEM)


def _pick_tile_h(h_out, w_out, n_batch, fixed_bytes, per_row_bytes, budget_bytes):
    """Largest legal divisor of h_out fitting the VMEM budget.

    Prefers tiles whose output block is lane-dense ((tile_h*W_out) % 128 == 0) and
    configurations exposing >= 4 parallel grid steps (megacore / 2-TC v7x).
    """
    divs = [c for c in range(1, h_out + 1) if h_out % c == 0]
    legal = [c for c in divs if (c * w_out) % 128 == 0 or c % 8 == 0 or c == h_out]
    dense = [c for c in legal if (c * w_out) % 128 == 0 or c == h_out]
    cands = sorted(dense or legal, reverse=True)
    want_tiles = max(1, -(-4 // max(n_batch, 1)))            # ceil(4 / n_batch)
    pref = [c for c in cands if h_out // c >= want_tiles] or cands
    for c in pref:
        if fixed_bytes + c * per_row_bytes <= budget_bytes:
            return c
    return min(cands)    # best effort; full-image VMEM residency is the real limiter


def upsample_conv_layer(x, weight, bias, *, kernel_size, stride, upsample=None,
                        matmul_dtype=None):
    """Forward pass matching PyTorch UpsampleConvLayer.

    x:      (N, C_in, H, W)      float32, NCHW
    weight: (C_out, C_in, k, k)  OIHW
    bias:   (C_out,)
    matmul_dtype: optional MXU input dtype (e.g. jnp.bfloat16); accumulation stays f32.
    returns (N, C_out, H_out, W_out) NCHW
    """
    n, c_in, h, w = x.shape
    c_out = weight.shape[0]
    k = kernel_size
    u = int(upsample) if upsample else 1
    p = k // 2

    h_up, w_up = h * u, w * u
    h_out = (h_up + 2 * p - k) // stride + 1
    w_out = (w_up + 2 * p - k) // stride + 1
    w_pad = w_up + 2 * p

    # ---- wrapper glue (W direction only): nearest upsample + reflection pad ----
    # TODO(synk): fold this into the kernel to avoid the HBM round trip (v5e).
    x_w = jnp.repeat(x, u, axis=3) if u > 1 else x                  # (N, C_in, H, W_up)
    if p > 0:
        left = x_w[:, :, :, 1:p + 1][..., ::-1]
        right = x_w[:, :, :, -p - 1:-1][..., ::-1]
        x_w = jnp.concatenate([left, x_w, right], axis=3)           # (N, C_in, H, W_pad)

    # ---- static row map fusing the H-direction upsample + reflection pad ----
    rows_total = (h_out - 1) * stride + k
    i = np.arange(rows_total) - p
    i = np.where(i < 0, -i, i)
    i = np.where(i > h_up - 1, 2 * (h_up - 1) - i, i)
    row_src = (i // u).astype(np.int64)                             # padded row -> orig row

    # weights OIHW -> (C_out, k*k*C_in); K ordered (dy, dx, ci) to match the im2col concat.
    kk = k * k * c_in
    w_mat = jnp.transpose(weight, (0, 2, 3, 1)).reshape(c_out, kk)
    if matmul_dtype is not None:
        w_mat = w_mat.astype(matmul_dtype)
    b_col = bias.reshape(c_out, 1).astype(jnp.float32)

    # ---- hardware-derived VMEM budget and tile size ----
    cap = _vmem_capacity_bytes()
    budget = int(cap * 0.4)
    itm = x.dtype.itemsize
    fixed = itm * 2 * c_in * h * w_pad + 4 * 2 * (c_out * kk + c_out)   # input x2 bufs + w/b
    per_row = (itm * c_in * stride * w_pad                              # window rows
               + 4 * (2 * kk * w_out + 3 * c_out * w_out))              # patches + acc/out
    tile_h = _pick_tile_h(h_out, w_out, n, fixed, per_row, budget)
    n_h_tiles = h_out // tile_h
    rows_in = (tile_h - 1) * stride + k
    rows_alloc = rows_in + (u - 1)              # spill rows for the u-row group stores
    flat_out = ((tile_h * w_out) % 128 == 0) or (tile_h == h_out)

    src_tbl, dst_tbl, n_groups = _build_row_groups(row_src, n_h_tiles, tile_h, stride, k, u)

    if flat_out:
        out_shape = jax.ShapeDtypeStruct((n, c_out, h_out * w_out), x.dtype)
        out_spec = pl.BlockSpec((None, c_out, tile_h * w_out),
                                lambda b, t, s, d: (b, 0, t))
    else:
        out_shape = jax.ShapeDtypeStruct((n, c_out, h_out, w_out), x.dtype)
        out_spec = pl.BlockSpec((None, c_out, tile_h, w_out),
                                lambda b, t, s, d: (b, 0, t, 0))

    grid_spec = pltpu.PrefetchScalarGridSpec(
        num_scalar_prefetch=2,
        grid=(n, n_h_tiles),
        in_specs=[
            # Whole (W-preprocessed) image per batch element; the block index only
            # depends on b, so the DMA is skipped across consecutive h-tiles.
            # TODO(synk): tile this along H (manual halo DMA) for images whose
            #             double-buffered block would not fit v7x's 64 MiB VMEM.
            pl.BlockSpec((None, c_in, h, w_pad), lambda b, t, s, d: (b, 0, 0, 0)),
            pl.BlockSpec((c_out, kk), lambda b, t, s, d: (0, 0)),
            pl.BlockSpec((c_out, 1), lambda b, t, s, d: (0, 0)),
        ],
        out_specs=out_spec,
        scratch_shapes=[pltpu.VMEM((c_in, rows_alloc, w_pad), x.dtype)],
    )

    out = pl.pallas_call(
        partial(_upsample_conv_kernel, k=k, stride=stride, tile_h=tile_h, w_out=w_out,
                u=u, n_groups=n_groups, flat_out=flat_out, matmul_dtype=matmul_dtype),
        out_shape=out_shape,
        grid_spec=grid_spec,
        compiler_params=pltpu.CompilerParams(
            dimension_semantics=("parallel", "parallel"),
            vmem_limit_bytes=max(32 * 1024 * 1024, cap - 8 * 1024 * 1024),
        ),
    )(src_tbl, dst_tbl, x_w, w_mat, b_col)

    if flat_out:
        out = out.reshape(n, c_out, h_out, w_out)
    return out


def _reference_forward(x, weight, bias, *, kernel_size, stride, upsample=None):
    # Pure-JAX reference (same semantics as the PyTorch module) for validation.
    if upsample:
        x = jnp.repeat(jnp.repeat(x, upsample, axis=2), upsample, axis=3)
    p = kernel_size // 2
    x = jnp.pad(x, ((0, 0), (0, 0), (p, p), (p, p)), mode="reflect")
    out = lax.conv_general_dilated(
        x, weight, window_strides=(stride, stride), padding="VALID",
        dimension_numbers=("NCHW", "OIHW", "NCHW"))
    return out + bias[None, :, None, None]


if __name__ == "__main__":
    # UpsampleConvLayer(in_channels=4, out_channels=8, kernel_size=3, stride=1, upsample=2)
    N, C_IN, H, W = 2, 4, 16, 16
    C_OUT, K, STRIDE, UPSAMPLE = 8, 3, 1, 2

    key = jax.random.PRNGKey(0)
    kx, kw, kb = jax.random.split(key, 3)

    x = jax.random.normal(kx, (N, C_IN, H, W), dtype=jnp.float32)

    # Deterministic init mimicking PyTorch Conv2d default (uniform +-1/sqrt(fan_in)).
    fan_in = C_IN * K * K
    bound = 1.0 / (fan_in ** 0.5)
    weight = jax.random.uniform(kw, (C_OUT, C_IN, K, K), dtype=jnp.float32,
                                minval=-bound, maxval=bound)
    bias = jax.random.uniform(kb, (C_OUT,), dtype=jnp.float32,
                              minval=-bound, maxval=bound)

    out = upsample_conv_layer(x, weight, bias, kernel_size=K, stride=STRIDE,
                              upsample=UPSAMPLE)
    out = jax.block_until_ready(out)

    ref = _reference_forward(x, weight, bias, kernel_size=K, stride=STRIDE,
                             upsample=UPSAMPLE)
    ref = jax.block_until_ready(ref)

    assert out.shape == ref.shape, (out.shape, ref.shape)
    assert jnp.allclose(out, ref, atol=1e-4, rtol=1e-4), "mismatch vs reference"

    print("KERNEL_OK")
</pallas_src>

<mosaic_0001>
module attributes {stable_mosaic.version = 11 : i64} {
  func.func @_upsample_conv_kernel(%arg0: i32, %arg1: i32, %arg2: memref<20xi32, #tpu.memory_space<smem>>, %arg3: memref<20xi32, #tpu.memory_space<smem>>, %arg4: memref<1x4x16x34xf32, #tpu.memory_space<vmem>>, %arg5: memref<8x36xf32, #tpu.memory_space<vmem>>, %arg6: memref<8x1xf32, #tpu.memory_space<vmem>>, %arg7: memref<1x8x512xf32, #tpu.memory_space<vmem>>, %arg8: memref<4x19x34xf32, #tpu.memory_space<vmem>>) attributes {dimension_semantics = [#tpu.dimension_semantics<parallel>, #tpu.dimension_semantics<parallel>], iteration_bounds = array<i64: 2, 2>, scalar_prefetch = 2 : i64, scratch_operands = 1 : i64, tpu.core_type = #tpu.core_type<tc>, window_params = [{transform_indices = @transform_0, window_bounds = array<i64: 1, 4, 16, 34>}, {pipeline_mode = #tpu.pipeline_mode<synchronous>, transform_indices = @transform_1, window_bounds = array<i64: 8, 36>}, {pipeline_mode = #tpu.pipeline_mode<synchronous>, transform_indices = @transform_2, window_bounds = array<i64: 8, 1>}, {transform_indices = @transform_3, window_bounds = array<i64: 1, 8, 512>}]} {
    %c10_i32 = arith.constant 10 : i32
    %0 = arith.muli %arg1, %c10_i32 : i32
    %c0_i32 = arith.constant 0 : i32
    %1 = arith.addi %0, %c0_i32 : i32
    %2 = arith.index_cast %1 : i32 to index
    %3 = memref.load %arg2[%2] : memref<20xi32, #tpu.memory_space<smem>>
    %c0_i32_0 = arith.constant 0 : i32
    %4 = arith.addi %0, %c0_i32_0 : i32
    %5 = arith.index_cast %4 : i32 to index
    %6 = memref.load %arg3[%5] : memref<20xi32, #tpu.memory_space<smem>>
    %c0 = arith.constant 0 : index
    %c0_1 = arith.constant 0 : index
    %7 = arith.index_cast %3 : i32 to index
    %c0_2 = arith.constant 0 : index
    %8 = vector.load %arg4[%c0, %c0_1, %7, %c0_2] : memref<1x4x16x34xf32, #tpu.memory_space<vmem>>, vector<1x4x1x34xf32>
    %9 = vector.shape_cast %8 : vector<1x4x1x34xf32> to vector<4x1x34xf32>
    %10 = vector.shape_cast %9 : vector<4x1x34xf32> to vector<4x1x34xf32>
    %11 = vector.broadcast %10 : vector<4x1x34xf32> to vector<4x2x34xf32>
    %c0_3 = arith.constant 0 : index
    %12 = arith.index_cast %6 : i32 to index
    %c0_4 = arith.constant 0 : index
    %13 = vector.load %arg8[%c0_3, %12, %c0_4] : memref<4x19x34xf32, #tpu.memory_space<vmem>>, vector<4x2x34xf32>
    tpu.vector_store %arg8[%c0_3, %12, %c0_4], %11 {strides = array<i32>} : memref<4x19x34xf32, #tpu.memory_space<vmem>>, vector<4x2x34xf32>,
    %c1_i32 = arith.constant 1 : i32
    %14 = arith.addi %0, %c1_i32 : i32
    %15 = arith.index_cast %14 : i32 to index
    %16 = memref.load %arg2[%15] : memref<20xi32, #tpu.memory_space<smem>>
    %c1_i32_5 = arith.constant 1 : i32
    %17 = arith.addi %0, %c1_i32_5 : i32
    %18 = arith.index_cast %17 : i32 to index
    %19 = memref.load %arg3[%18] : memref<20xi32, #tpu.memory_space<smem>>
    %c0_6 = arith.constant 0 : index
    %c0_7 = arith.constant 0 : index
    %20 = arith.index_cast %16 : i32 to index
    %c0_8 = arith.constant 0 : index
    %21 = vector.load %arg4[%c0_6, %c0_7, %20, %c0_8] : memref<1x4x16x34xf32, #tpu.memory_space<vmem>>, vector<1x4x1x34xf32>
    %22 = vector.shape_cast %21 : vector<1x4x1x34xf32> to vector<4x1x34xf32>
    %23 = vector.shape_cast %22 : vector<4x1x34xf32> to vector<4x1x34xf32>
    %24 = vector.broadcast %23 : vector<4x1x34xf32> to vector<4x2x34xf32>
    %c0_9 = arith.constant 0 : index
    %25 = arith.index_cast %19 : i32 to index
    %c0_10 = arith.constant 0 : index
    %26 = vector.load %arg8[%c0_9, %25, %c0_10] : memref<4x19x34xf32, #tpu.memory_space<vmem>>, vector<4x2x34xf32>
    tpu.vector_store %arg8[%c0_9, %25, %c0_10], %24 {strides = array<i32>} : memref<4x19x34xf32, #tpu.memory_space<vmem>>, vector<4x2x34xf32>,
    %c2_i32 = arith.constant 2 : i32
    %27 = arith.addi %0, %c2_i32 : i32
    %28 = arith.index_cast %27 : i32 to index
    %29 = memref.load %arg2[%28] : memref<20xi32, #tpu.memory_space<smem>>
    %c2_i32_11 = arith.constant 2 : i32
    %30 = arith.addi %0, %c2_i32_11 : i32
    %31 = arith.index_cast %30 : i32 to index
    %32 = memref.load %arg3[%31] : memref<20xi32, #tpu.memory_space<smem>>
    %c0_12 = arith.constant 0 : index
    %c0_13 = arith.constant 0 : index
    %33 = arith.index_cast %29 : i32 to index
    %c0_14 = arith.constant 0 : index
    %34 = vector.load %arg4[%c0_12, %c0_13, %33, %c0_14] : memref<1x4x16x34xf32, #tpu.memory_space<vmem>>, vector<1x4x1x34xf32>
    %35 = vector.shape_cast %34 : vector<1x4x1x34xf32> to vector<4x1x34xf32>
    %36 = vector.shape_cast %35 : vector<4x1x34xf32> to vector<4x1x34xf32>
    %37 = vector.broadcast %36 : vector<4x1x34xf32> to vector<4x2x34xf32>
    %c0_15 = arith.constant 0 : index
    %38 = arith.index_cast %32 : i32 to index
    %c0_16 = arith.constant 0 : index
    %39 = vector.load %arg8[%c0_15, %38, %c0_16] : memref<4x19x34xf32, #tpu.memory_space<vmem>>, vector<4x2x34xf32>
    tpu.vector_store %arg8[%c0_15, %38, %c0_16], %37 {strides = array<i32>} : memref<4x19x34xf32, #tpu.memory_space<vmem>>, vector<4x2x34xf32>,
    %c3_i32 = arith.constant 3 : i32
    %40 = arith.addi %0, %c3_i32 : i32
    %41 = arith.index_cast %40 : i32 to index
    %42 = memref.load %arg2[%41] : memref<20xi32, #tpu.memory_space<smem>>
    %c3_i32_17 = arith.constant 3 : i32
    %43 = arith.addi %0, %c3_i32_17 : i32
    %44 = arith.index_cast %43 : i32 to index
    %45 = memref.load %arg3[%44] : memref<20xi32, #tpu.memory_space<smem>>
    %c0_18 = arith.constant 0 : index
    %c0_19 = arith.constant 0 : index
    %46 = arith.index_cast %42 : i32 to index
    %c0_20 = arith.constant 0 : index
    %47 = vector.load %arg4[%c0_18, %c0_19, %46, %c0_20] : memref<1x4x16x34xf32, #tpu.memory_space<vmem>>, vector<1x4x1x34xf32>
    %48 = vector.shape_cast %47 : vector<1x4x1x34xf32> to vector<4x1x34xf32>
    %49 = vector.shape_cast %48 : vector<4x1x34xf32> to vector<4x1x34xf32>
    %50 = vector.broadcast %49 : vector<4x1x34xf32> to vector<4x2x34xf32>
    %c0_21 = arith.constant 0 : index
    %51 = arith.index_cast %45 : i32 to index
    %c0_22 = arith.constant 0 : index
    %52 = vector.load %arg8[%c0_21, %51, %c0_22] : memref<4x19x34xf32, #tpu.memory_space<vmem>>, vector<4x2x34xf32>
    tpu.vector_store %arg8[%c0_21, %51, %c0_22], %50 {strides = array<i32>} : memref<4x19x34xf32, #tpu.memory_space<vmem>>, vector<4x2x34xf32>,
    %c4_i32 = arith.constant 4 : i32
    %53 = arith.addi %0, %c4_i32 : i32
    %54 = arith.index_cast %53 : i32 to index
    %55 = memref.load %arg2[%54] : memref<20xi32, #tpu.memory_space<smem>>
    %c4_i32_23 = arith.constant 4 : i32
    %56 = arith.addi %0, %c4_i32_23 : i32
    %57 = arith.index_cast %56 : i32 to index
    %58 = memref.load %arg3[%57] : memref<20xi32, #tpu.memory_space<smem>>
    %c0_24 = arith.constant 0 : index
    %c0_25 = arith.constant 0 : index
    %59 = arith.index_cast %55 : i32 to index
    %c0_26 = arith.constant 0 : index
    %60 = vector.load %arg4[%c0_24, %c0_25, %59, %c0_26] : memref<1x4x16x34xf32, #tpu.memory_space<vmem>>, vector<1x4x1x34xf32>
    %61 = vector.shape_cast %60 : vector<1x4x1x34xf32> to vector<4x1x34xf32>
    %62 = vector.shape_cast %61 : vector<4x1x34xf32> to vector<4x1x34xf32>
    %63 = vector.broadcast %62 : vector<4x1x34xf32> to vector<4x2x34xf32>
    %c0_27 = arith.constant 0 : index
    %64 = arith.index_cast %58 : i32 to index
    %c0_28 = arith.constant 0 : index
    %65 = vector.load %arg8[%c0_27, %64, %c0_28] : memref<4x19x34xf32, #tpu.memory_space<vmem>>, vector<4x2x34xf32>
    tpu.vector_store %arg8[%c0_27, %64, %c0_28], %63 {strides = array<i32>} : memref<4x19x34xf32, #tpu.memory_space<vmem>>, vector<4x2x34xf32>,
    %c5_i32 = arith.constant 5 : i32
    %66 = arith.addi %0, %c5_i32 : i32
    %67 = arith.index_cast %66 : i32 to index
    %68 = memref.load %arg2[%67] : memref<20xi32, #tpu.memory_space<smem>>
    %c5_i32_29 = arith.constant 5 : i32
    %69 = arith.addi %0, %c5_i32_29 : i32
    %70 = arith.index_cast %69 : i32 to index
    %71 = memref.load %arg3[%70] : memref<20xi32, #tpu.memory_space<smem>>
    %c0_30 = arith.constant 0 : index
    %c0_31 = arith.constant 0 : index
    %72 = arith.index_cast %68 : i32 to index
    %c0_32 = arith.constant 0 : index
    %73 = vector.load %arg4[%c0_30, %c0_31, %72, %c0_32] : memref<1x4x16x34xf32, #tpu.memory_space<vmem>>, vector<1x4x1x34xf32>
    %74 = vector.shape_cast %73 : vector<1x4x1x34xf32> to vector<4x1x34xf32>
    %75 = vector.shape_cast %74 : vector<4x1x34xf32> to vector<4x1x34xf32>
    %76 = vector.broadcast %75 : vector<4x1x34xf32> to vector<4x2x34xf32>
    %c0_33 = arith.constant 0 : index
    %77 = arith.index_cast %71 : i32 to index
    %c0_34 = arith.constant 0 : index
    %78 = vector.load %arg8[%c0_33, %77, %c0_34] : memref<4x19x34xf32, #tpu.memory_space<vmem>>, vector<4x2x34xf32>
    tpu.vector_store %arg8[%c0_33, %77, %c0_34], %76 {strides = array<i32>} : memref<4x19x34xf32, #tpu.memory_space<vmem>>, vector<4x2x34xf32>,
    %c6_i32 = arith.constant 6 : i32
    %79 = arith.addi %0, %c6_i32 : i32
    %80 = arith.index_cast %79 : i32 to index
    %81 = memref.load %arg2[%80] : memref<20xi32, #tpu.memory_space<smem>>
    %c6_i32_35 = arith.constant 6 : i32
    %82 = arith.addi %0, %c6_i32_35 : i32
    %83 = arith.index_cast %82 : i32 to index
    %84 = memref.load %arg3[%83] : memref<20xi32, #tpu.memory_space<smem>>
    %c0_36 = arith.constant 0 : index
    %c0_37 = arith.constant 0 : index
    %85 = arith.index_cast %81 : i32 to index
    %c0_38 = arith.constant 0 : index
    %86 = vector.load %arg4[%c0_36, %c0_37, %85, %c0_38] : memref<1x4x16x34xf32, #tpu.memory_space<vmem>>, vector<1x4x1x34xf32>
    %87 = vector.shape_cast %86 : vector<1x4x1x34xf32> to vector<4x1x34xf32>
    %88 = vector.shape_cast %87 : vector<4x1x34xf32> to vector<4x1x34xf32>
    %89 = vector.broadcast %88 : vector<4x1x34xf32> to vector<4x2x34xf32>
    %c0_39 = arith.constant 0 : index
    %90 = arith.index_cast %84 : i32 to index
    %c0_40 = arith.constant 0 : index
    %91 = vector.load %arg8[%c0_39, %90, %c0_40] : memref<4x19x34xf32, #tpu.memory_space<vmem>>, vector<4x2x34xf32>
    tpu.vector_store %arg8[%c0_39, %90, %c0_40], %89 {strides = array<i32>} : memref<4x19x34xf32, #tpu.memory_space<vmem>>, vector<4x2x34xf32>,
    %c7_i32 = arith.constant 7 : i32
    %92 = arith.addi %0, %c7_i32 : i32
    %93 = arith.index_cast %92 : i32 to index
    %94 = memref.load %arg2[%93] : memref<20xi32, #tpu.memory_space<smem>>
    %c7_i32_41 = arith.constant 7 : i32
    %95 = arith.addi %0, %c7_i32_41 : i32
    %96 = arith.index_cast %95 : i32 to index
    %97 = memref.load %arg3[%96] : memref<20xi32, #tpu.memory_space<smem>>
    %c0_42 = arith.constant 0 : index
    %c0_43 = arith.constant 0 : index
    %98 = arith.index_cast %94 : i32 to index
    %c0_44 = arith.constant 0 : index
    %99 = vector.load %arg4[%c0_42, %c0_43, %98, %c0_44] : memref<1x4x16x34xf32, #tpu.memory_space<vmem>>, vector<1x4x1x34xf32>
    %100 = vector.shape_cast %99 : vector<1x4x1x34xf32> to vector<4x1x34xf32>
    %101 = vector.shape_cast %100 : vector<4x1x34xf32> to vector<4x1x34xf32>
    %102 = vector.broadcast %101 : vector<4x1x34xf32> to vector<4x2x34xf32>
    %c0_45 = arith.constant 0 : index
    %103 = arith.index_cast %97 : i32 to index
    %c0_46 = arith.constant 0 : index
    %104 = vector.load %arg8[%c0_45, %103, %c0_46] : memref<4x19x34xf32, #tpu.memory_space<vmem>>, vector<4x2x34xf32>
    tpu.vector_store %arg8[%c0_45, %103, %c0_46], %102 {strides = array<i32>} : memref<4x19x34xf32, #tpu.memory_space<vmem>>, vector<4x2x34xf32>,
    %c8_i32 = arith.constant 8 : i32
    %105 = arith.addi %0, %c8_i32 : i32
    %106 = arith.index_cast %105 : i32 to index
    %107 = memref.load %arg2[%106] : memref<20xi32, #tpu.memory_space<smem>>
    %c8_i32_47 = arith.constant 8 : i32
    %108 = arith.addi %0, %c8_i32_47 : i32
    %109 = arith.index_cast %108 : i32 to index
    %110 = memref.load %arg3[%109] : memref<20xi32, #tpu.memory_space<smem>>
    %c0_48 = arith.constant 0 : index
    %c0_49 = arith.constant 0 : index
    %111 = arith.index_cast %107 : i32 to index
    %c0_50 = arith.constant 0 : index
    %112 = vector.load %arg4[%c0_48, %c0_49, %111, %c0_50] : memref<1x4x16x34xf32, #tpu.memory_space<vmem>>, vector<1x4x1x34xf32>
    %113 = vector.shape_cast %112 : vector<1x4x1x34xf32> to vector<4x1x34xf32>
    %114 = vector.shape_cast %113 : vector<4x1x34xf32> to vector<4x1x34xf32>
    %115 = vector.broadcast %114 : vector<4x1x34xf32> to vector<4x2x34xf32>
    %c0_51 = arith.constant 0 : index
    %116 = arith.index_cast %110 : i32 to index
    %c0_52 = arith.constant 0 : index
    %117 = vector.load %arg8[%c0_51, %116, %c0_52] : memref<4x19x34xf32, #tpu.memory_space<vmem>>, vector<4x2x34xf32>
    tpu.vector_store %arg8[%c0_51, %116, %c0_52], %115 {strides = array<i32>} : memref<4x19x34xf32, #tpu.memory_space<vmem>>, vector<4x2x34xf32>,
    %c9_i32 = arith.constant 9 : i32
    %118 = arith.addi %0, %c9_i32 : i32
    %119 = arith.index_cast %118 : i32 to index
    %120 = memref.load %arg2[%119] : memref<20xi32, #tpu.memory_space<smem>>
    %c9_i32_53 = arith.constant 9 : i32
    %121 = arith.addi %0, %c9_i32_53 : i32
    %122 = arith.index_cast %121 : i32 to index
    %123 = memref.load %arg3[%122] : memref<20xi32, #tpu.memory_space<smem>>
    %c0_54 = arith.constant 0 : index
    %c0_55 = arith.constant 0 : index
    %124 = arith.index_cast %120 : i32 to index
    %c0_56 = arith.constant 0 : index
    %125 = vector.load %arg4[%c0_54, %c0_55, %124, %c0_56] : memref<1x4x16x34xf32, #tpu.memory_space<vmem>>, vector<1x4x1x34xf32>
    %126 = vector.shape_cast %125 : vector<1x4x1x34xf32> to vector<4x1x34xf32>
    %127 = vector.shape_cast %126 : vector<4x1x34xf32> to vector<4x1x34xf32>
    %128 = vector.broadcast %127 : vector<4x1x34xf32> to vector<4x2x34xf32>
    %c0_57 = arith.constant 0 : index
    %129 = arith.index_cast %123 : i32 to index
    %c0_58 = arith.constant 0 : index
    %130 = vector.load %arg8[%c0_57, %129, %c0_58] : memref<4x19x34xf32, #tpu.memory_space<vmem>>, vector<4x2x34xf32>
    tpu.vector_store %arg8[%c0_57, %129, %c0_58], %128 {strides = array<i32>} : memref<4x19x34xf32, #tpu.memory_space<vmem>>, vector<4x2x34xf32>,
    %c0_59 = arith.constant 0 : index
    %c0_60 = arith.constant 0 : index
    %c0_61 = arith.constant 0 : index
    %131 = vector.load %arg8[%c0_59, %c0_60, %c0_61] : memref<4x19x34xf32, #tpu.memory_space<vmem>>, vector<4x16x32xf32>
    %c0_62 = arith.constant 0 : index
    %c0_63 = arith.constant 0 : index
    %c1 = arith.constant 1 : index
    %132 = vector.load %arg8[%c0_62, %c0_63, %c1] : memref<4x19x34xf32, #tpu.memory_space<vmem>>, vector<4x16x32xf32>
    %c0_64 = arith.constant 0 : index
    %c0_65 = arith.constant 0 : index
    %c2 = arith.constant 2 : index
    %133 = vector.load %arg8[%c0_64, %c0_65, %c2] : memref<4x19x34xf32, #tpu.memory_space<vmem>>, vector<4x16x32xf32>
    %c0_66 = arith.constant 0 : index
    %c1_67 = arith.constant 1 : index
    %c0_68 = arith.constant 0 : index
    %134 = vector.load %arg8[%c0_66, %c1_67, %c0_68] : memref<4x19x34xf32, #tpu.memory_space<vmem>>, vector<4x16x32xf32>
    %c0_69 = arith.constant 0 : index
    %c1_70 = arith.constant 1 : index
    %c1_71 = arith.constant 1 : index
    %135 = vector.load %arg8[%c0_69, %c1_70, %c1_71] : memref<4x19x34xf32, #tpu.memory_space<vmem>>, vector<4x16x32xf32>
    %c0_72 = arith.constant 0 : index
    %c1_73 = arith.constant 1 : index
    %c2_74 = arith.constant 2 : index
    %136 = vector.load %arg8[%c0_72, %c1_73, %c2_74] : memref<4x19x34xf32, #tpu.memory_space<vmem>>, vector<4x16x32xf32>
    %c0_75 = arith.constant 0 : index
    %c2_76 = arith.constant 2 : index
    %c0_77 = arith.constant 0 : index
    %137 = vector.load %arg8[%c0_75, %c2_76, %c0_77] : memref<4x19x34xf32, #tpu.memory_space<vmem>>, vector<4x16x32xf32>
    %c0_78 = arith.constant 0 : index
    %c2_79 = arith.constant 2 : index
    %c1_80 = arith.constant 1 : index
    %138 = vector.load %arg8[%c0_78, %c2_79, %c1_80] : memref<4x19x34xf32, #tpu.memory_space<vmem>>, vector<4x16x32xf32>
    %c0_81 = arith.constant 0 : index
    %c2_82 = arith.constant 2 : index
    %c2_83 = arith.constant 2 : index
    %139 = vector.load %arg8[%c0_81, %c2_82, %c2_83] : memref<4x19x34xf32, #tpu.memory_space<vmem>>, vector<4x16x32xf32>
    %140 = tpu.concatenate %131, %132, %133, %134, %135, %136, %137, %138, %139 in 0 : vector<4x16x32xf32>, vector<4x16x32xf32>, vector<4x16x32xf32>, vector<4x16x32xf32>, vector<4x16x32xf32>, vector<4x16x32xf32>, vector<4x16x32xf32>, vector<4x16x32xf32>, vector<4x16x32xf32> -> vector<36x16x32xf32>
    %141 = vector.shape_cast %140 : vector<36x16x32xf32> to vector<36x512xf32>
    %c0_84 = arith.constant 0 : index
    %c0_85 = arith.constant 0 : index
    %142 = vector.load %arg5[%c0_84, %c0_85] : memref<8x36xf32, #tpu.memory_space<vmem>>, vector<8x36xf32>
    %cst = arith.constant dense<0.000000e+00> : vector<8x512xf32>
    %143 = tpu.matmul %142, %141, %cst {dimension_numbers = #tpu.dot_dimension_numbers<[1], [0], [0], [1], [0, 0, 1, 1], [], []>} : vector<8x36xf32>, vector<36x512xf32>, vector<8x512xf32> -> vector<8x512xf32>
    %c0_86 = arith.constant 0 : index
    %c0_87 = arith.constant 0 : index
    %144 = vector.load %arg6[%c0_86, %c0_87] : memref<8x1xf32, #tpu.memory_space<vmem>>, vector<8x1xf32>
    %145 = vector.broadcast %144 : vector<8x1xf32> to vector<8x512xf32>
    %146 = arith.addf %143, %145 : vector<8x512xf32>
    %c0_88 = arith.constant 0 : index
    %c0_89 = arith.constant 0 : index
    %c0_90 = arith.constant 0 : index
    %147 = vector.load %arg7[%c0_88, %c0_89, %c0_90] : memref<1x8x512xf32, #tpu.memory_space<vmem>>, vector<1x8x512xf32>
    %148 = vector.shape_cast %147 : vector<1x8x512xf32> to vector<8x512xf32>
    %149 = vector.shape_cast %146 : vector<8x512xf32> to vector<1x8x512xf32>
    tpu.vector_store %arg7[%c0_88, %c0_89, %c0_90], %149 {strides = array<i32>} : memref<1x8x512xf32, #tpu.memory_space<vmem>>, vector<1x8x512xf32>,
    return
  }
  func.func @transform_0(%arg0: i32, %arg1: i32, %arg2: memref<20xi32, #tpu.memory_space<smem>>, %arg3: memref<20xi32, #tpu.memory_space<smem>>) -> (i32, i32, i32, i32) {
    %c0_i32 = arith.constant 0 : i32
    %c0_i32_0 = arith.constant 0 : i32
    %c0_i32_1 = arith.constant 0 : i32
    %c0_i32_2 = arith.constant 0 : i32
    return %arg0, %c0_i32, %c0_i32_0, %c0_i32_1 : i32, i32, i32, i32
  }
  func.func @transform_1(%arg0: i32, %arg1: i32, %arg2: memref<20xi32, #tpu.memory_space<smem>>, %arg3: memref<20xi32, #tpu.memory_space<smem>>) -> (i32, i32) {
    %c0_i32 = arith.constant 0 : i32
    %c0_i32_0 = arith.constant 0 : i32
    %c0_i32_1 = arith.constant 0 : i32
    return %c0_i32, %c0_i32_0 : i32, i32
  }
  func.func @transform_2(%arg0: i32, %arg1: i32, %arg2: memref<20xi32, #tpu.memory_space<smem>>, %arg3: memref<20xi32, #tpu.memory_space<smem>>) -> (i32, i32) {
    %c0_i32 = arith.constant 0 : i32
    %c0_i32_0 = arith.constant 0 : i32
    %c0_i32_1 = arith.constant 0 : i32
    return %c0_i32, %c0_i32_0 : i32, i32
  }
  func.func @transform_3(%arg0: i32, %arg1: i32, %arg2: memref<20xi32, #tpu.memory_space<smem>>, %arg3: memref<20xi32, #tpu.memory_space<smem>>) -> (i32, i32, i32) {
    %c0_i32 = arith.constant 0 : i32
    %c0_i32_0 = arith.constant 0 : i32
    return %arg0, %c0_i32, %arg1 : i32, i32, i32
  }
}

</mosaic_0001>

<llo_original>
// kernel: tpu_custom_call.1
$region0: #{tpu_custom_call.1}
  #allocation0 [shape = 'u32[]', space=smem, size = 0x4, offset = 0x4, fixed_abs, tag = 'smem constant byte address 0x4 - core index']
  #allocation1 [shape = 'u32[144,128]{1,0:T(1,128)}', space=vmem, size = 0x12000, scoped, tag = 'internal scratch']
  #allocation2 [shape = 'f32[4,19,34]{2,1,0:T(8,128)}', space=vmem, size = 0xc000, scoped, tag = 'scratch operand']
  #allocation3 [shape = 's32[1]{0}', space=sflag, size = 0x4, scoped, tag = 'scoped memory for tpu_custom_call.1']
  #allocation4 [shape = 'u8[512]{0}', space=smem, size = 0x200, scoped, tag = 'prefetched SMEM operand 0']
  #allocation5 [shape = 'u8[512]{0}', space=smem, size = 0x200, scoped, tag = 'prefetched SMEM operand 1']
  %s0 = inlined_call_operand.vmem [shape: s32[20], index: 0, kind: input, shape index: {}]
  %s1 = inlined_call_operand.vmem [shape: s32[20], index: 1, kind: input, shape index: {}]
  %s2 = inlined_call_operand.hbm [shape: f32[2,4,16,34], index: 2, kind: input, shape index: {}]
  %s3 = inlined_call_operand.vmem [shape: f32[8,36], index: 3, kind: input, shape index: {}]
  %s4 = inlined_call_operand.vmem [shape: f32[8,1], index: 4, kind: input, shape index: {}]
  %s5 = inlined_call_operand.hbm [shape: f32[2,8,1024], index: 5, kind: output, shape index: {}]
  %s6 = sld [smem:[#allocation0]]
  $region49: #{tpu_custom_call.1} parent=0
    _
  %s8 = ssub.s32 1, %s6
  %s9 = scalar_select 0, %s8, %s6
  %s10 = sshll.u32 %s0, 4
  %s11 = int_to_ptr.vmem [resolvable:$true] %s10
  %13 = dma.vmem_to_smem %s11, 16, [#allocation4], [#allocation3]
  %s14 = sshll.u32 %s1, 4
  %s15 = int_to_ptr.vmem [resolvable:$true] %s14
  %17 = dma.vmem_to_smem %s15, 16, [#allocation5], [#allocation3]
  %18 = dma.done [#allocation3], 32
  %19 = sfence
  $region1: #{tpu_custom_call.1} parent=0
    #allocation6 [shape = 'u8[65536]{0}', space=vmem, size = 0x10000, scoped, tag = 'input window, operand 2']
    #allocation7 [shape = 's32[2]{0}', space=sflag, size = 0x8, scoped, tag = 'scoped memory for tpu_custom_call.1']
    #allocation8 [shape = 's32[2]{0}', space=sflag, size = 0x8, scoped, tag = 'scoped memory for tpu_custom_call.1']
    #allocation9 [shape = 'u8[32768]{0}', space=vmem, size = 0x8000, scoped, tag = 'output window, operand 0']
    %20 = vsyncpa [#allocation7], 0
    %s21 = scalar_lea.sflag [#allocation7], 1
    %22 = vsyncpa %s21, 0
    %23 = vsyncpa [#allocation8], 0
    %s24 = scalar_lea.sflag [#allocation8], 1
    %25 = vsyncpa %s24, 0
    loop: start=0, step=1, limit=6
    $region2: #{tpu_custom_call.1} parent=1 // loop_pre_header
      _
    $region3: #{tpu_custom_call.1} parent=1 // loop_header
      %s27 = sphi 0, %s31
      %p28 = scmp.ge.s32.totalorder %s27, 6
      %s34 = sphi 0, %s46
      %s35 = sphi 0, %s42
      %s36 = sphi 0, %s34
      %s37 = sphi 0, %s35
      %s38 = sphi 0, %s36
      %s39 = sphi 0, %s37
      %s49 = sphi 0, %s51
      %s52 = sphi 0, %s49
      %s53 = sphi 0, %s52
      %s69 = sphi 0, %s53
      %s73 = sphi 0, %s73
      %s75 = sphi 0, %s73
      %s76 = sphi 0, %s75
      %s90 = sphi 0, %s76
      %s94 = sphi 0, %s94
      %s96 = sphi 0, %s94
      %s97 = sphi 0, %s96
      %s111 = sphi 0, %s97
      %s119 = sphi 0, %s121
      %s122 = sphi 0, %s119
      %s123 = sphi 0, %s122
      %s139 = sphi 0, %s123
    $region4: #{tpu_custom_call.1} parent=1 // loop_header_branch
      %30 = sbr.rel (%p28) target = $region8
    $region5: #{tpu_custom_call.1} parent=1 // loop_body
      %s32 = ssub.s32 %s27, 1
      %s33 = ssub.s32 %s27, 2
      %s40 = sadd.s32 1, %s35
      %p41 = scmp.ge.s32.totalorder %s40, 2
      %s42 = scalar_select %p41, 0, %s40
      %s43 = sadd.s32 1, %s34
      %s44 = scalar_select %p41, %s43, %s34
      %p45 = scmp.ge.s32.totalorder %s44, 2
      %s46 = scalar_select %p45, 0, %s44
      %s47 = ssub.s32 %s34, %s46
      %p48 = scmp.eq.s32.totalorder %s47, 0
      %s50 = sadd.s32 %s49, 1
      %s51 = scalar_select %p48, %s49, %s50
      %p54 = pneg %p48
      %p55 = scmp.eq.s32.totalorder %s27, 3
      %p56 = por %p54, %p55
      %p57 = scmp.ne.s32.totalorder %s49, %s52
      %p58 = scmp.eq.s32.totalorder %s27, 0
      %p59 = por %p57, %p58
      %p60 = scmp.ne.s32.totalorder %s49, %s52
      %p61 = scmp.eq.s32.totalorder %s32, 3
      %p62 = por %p60, %p61
      %p63 = scmp.ne.s32.totalorder %s52, %s53
      %p64 = scmp.eq.s32.totalorder %s32, 0
      %p65 = por %p63, %p64
      %p66 = scmp.ne.s32.totalorder %s52, %s53
      %p67 = scmp.eq.s32.totalorder %s33, 3
      %p68 = por %p66, %p67
      %p70 = scmp.ne.s32.totalorder %s53, %s69
      %p71 = scmp.eq.s32.totalorder %s33, 0
      %p72 = por %p70, %p71
      %s74 = sadd.s32 %s73, 1
      %p77 = scmp.eq.s32.totalorder %s27, 3
      %p78 = scmp.ne.s32.totalorder %s73, %s75
      %p79 = scmp.eq.s32.totalorder %s27, 0
      %p80 = por %p78, %p79
      %p81 = scmp.ne.s32.totalorder %s73, %s75
      %p82 = scmp.eq.s32.totalorder %s32, 3
      %p83 = por %p81, %p82
      %p84 = scmp.ne.s32.totalorder %s75, %s76
      %p85 = scmp.eq.s32.totalorder %s32, 0
      %p86 = por %p84, %p85
      %p87 = scmp.ne.s32.totalorder %s75, %s76
      %p88 = scmp.eq.s32.totalorder %s33, 3
      %p89 = por %p87, %p88
      %p91 = scmp.ne.s32.totalorder %s76, %s90
      %p92 = scmp.eq.s32.totalorder %s33, 0
      %p93 = por %p91, %p92
      %s95 = sadd.s32 %s94, 1
      %p98 = scmp.eq.s32.totalorder %s27, 3
      %p99 = scmp.ne.s32.totalorder %s94, %s96
      %p100 = scmp.eq.s32.totalorder %s27, 0
      %p101 = por %p99, %p100
      %p102 = scmp.ne.s32.totalorder %s94, %s96
      %p103 = scmp.eq.s32.totalorder %s32, 3
      %p104 = por %p102, %p103
      %p105 = scmp.ne.s32.totalorder %s96, %s97
      %p106 = scmp.eq.s32.totalorder %s32, 0
      %p107 = por %p105, %p106
      %p108 = scmp.ne.s32.totalorder %s96, %s97
      %p109 = scmp.eq.s32.totalorder %s33, 3
      %p110 = por %p108, %p109
      %p112 = scmp.ne.s32.totalorder %s97, %s111
      %p113 = scmp.eq.s32.totalorder %s33, 0
      %p114 = por %p112, %p113
      %s115 = ssub.s32 %s34, %s46
      %s116 = ssub.s32 %s35, %s42
      %s117 = sor.u32 %s115, %s116
      %p118 = scmp.eq.s32.totalorder %s117, 0
      %s120 = sadd.s32 %s119, 1
      %s121 = scalar_select %p118, %s119, %s120
      %p124 = pneg %p118
      %p125 = scmp.eq.s32.totalorder %s27, 3
      %p126 = por %p124, %p125
      %p127 = scmp.ne.s32.totalorder %s119, %s122
      %p128 = scmp.eq.s32.totalorder %s27, 0
      %p129 = por %p127, %p128
      %p130 = scmp.ne.s32.totalorder %s119, %s122
      %p131 = scmp.eq.s32.totalorder %s32, 3
      %p132 = por %p130, %p131
      %p133 = scmp.ne.s32.totalorder %s122, %s123
      %p134 = scmp.eq.s32.totalorder %s32, 0
      %p135 = por %p133, %p134
      %p136 = scmp.ne.s32.totalorder %s122, %s123
      %p137 = scmp.eq.s32.totalorder %s33, 3
      %p138 = por %p136, %p137
      %p140 = scmp.ne.s32.totalorder %s123, %s139
      %p141 = scmp.eq.s32.totalorder %s33, 0
      %p142 = por %p140, %p141
      %p143 = scmp.le.s32.totalorder 1, %s27
      %p144 = scmp.lt.s32.totalorder %s27, 5
      %p145 = pnand %p143, %p144
      %p146 = pneg %p145
      // Predicated region
      $region9: #{tpu_custom_call.1} parent=5 // pred_check
        _
      $region10: #{tpu_custom_call.1} parent=5 // pred_check_branch
        %148 = sbr.rel (%p145) target = $region12
      $region11: #{tpu_custom_call.1} parent=5 // pred_region
        %s149 = ssub.s32 %s27, 1
        // Predicated region
        $region13: #{tpu_custom_call.1} parent=11 // pred_check
          %p150 = pneg %p86
        $region14: #{tpu_custom_call.1} parent=11 // pred_check_branch
          %152 = sbr.rel (%p150) target = $region16
        $region15: #{tpu_custom_call.1} parent=11 // pred_region
          _
        $region16: #{tpu_custom_call.1} parent=11 // pred_fallthru
          _
        // Predicated region
        $region17: #{tpu_custom_call.1} parent=11 // pred_check
          %p153 = pneg %p107
        $region18: #{tpu_custom_call.1} parent=11 // pred_check_branch
          %155 = sbr.rel (%p153) target = $region20
        $region19: #{tpu_custom_call.1} parent=11 // pred_region
          _
        $region20: #{tpu_custom_call.1} parent=11 // pred_fallthru
          _
      $region12: #{tpu_custom_call.1} parent=5 // pred_fallthru
        _
      %p156 = scmp.lt.s32.totalorder %s27, 4
      // Predicated region
      $region21: #{tpu_custom_call.1} parent=5 // pred_check
        %p157 = pneg %p156
      $region22: #{tpu_custom_call.1} parent=5 // pred_check_branch
        %159 = sbr.rel (%p157) target = $region24
      $region23: #{tpu_custom_call.1} parent=5 // pred_region
        // Predicated region
        $region25: #{tpu_custom_call.1} parent=23 // pred_check
          %p160 = pneg %p59
        $region26: #{tpu_custom_call.1} parent=23 // pred_check_branch
          %162 = sbr.rel (%p160) target = $region28
        $region27: #{tpu_custom_call.1} parent=23 // pred_region
          %s163 = sand.u32 %s49, 1
          %s164 = scalar_lea.sflag [#allocation7], %s163
          %s165 = sand.u32 %s49, 1
          %s166 = smul.addr %s165, 64
          %s167 = scalar_lea.vmem [#allocation6], %s166
          %s169 = ssub.s32 1024, 1024
          %170 = vsyncadd %s164, %s169
          %s171 = smul.addr %s34, 8
          %s172 = smul.addr %s171, 128
          %s173 = scalar_lea.hbm %s2, %s172
          %s174 = sshll.u32 %s167, 4
          %s175 = int_to_ptr.vmem [resolvable:$true] %s174
          %180 = dma.hbm_to_vmem [thread:$0]  %s173, 1024, %s175, %s164, 128, 128, 8
        $region28: #{tpu_custom_call.1} parent=23 // pred_fallthru
          _
      $region24: #{tpu_custom_call.1} parent=5 // pred_fallthru
        _
      %p181 = scmp.le.s32.totalorder 1, %s27
      %p182 = scmp.lt.s32.totalorder %s27, 5
      %p183 = pnand %p181, %p182
      %p184 = pneg %p183
      // Predicated region
      $region29: #{tpu_custom_call.1} parent=5 // pred_check
        _
      $region30: #{tpu_custom_call.1} parent=5 // pred_check_branch
        %186 = sbr.rel (%p183) target = $region32
      $region31: #{tpu_custom_call.1} parent=5 // pred_region
        %s187 = ssub.s32 %s27, 1
        %s188 = sand.u32 %s52, 1
        %s189 = scalar_lea.sflag [#allocation7], %s188
        %s190 = sand.u32 %s52, 1
        %s191 = smul.addr %s190, 64
        %s192 = scalar_lea.vmem [#allocation6], %s191
        // Predicated region
        $region33: #{tpu_custom_call.1} parent=31 // pred_check
          %p193 = pneg %p65
        $region34: #{tpu_custom_call.1} parent=31 // pred_check_branch
          %195 = sbr.rel (%p193) target = $region36
        $region35: #{tpu_custom_call.1} parent=31 // pred_region
          %196 = dma.done %s189, 1024
        $region36: #{tpu_custom_call.1} parent=31 // pred_fallthru
          _
        %s197 = sand.u32 %s52, 1
        %s198 = scalar_lea.sflag [#allocation7], %s197
        %s199 = sand.u32 %s52, 1
        %s200 = smul.addr %s199, 64
        %s201 = scalar_lea.vmem [#allocation6], %s200
        %p202 = pneg %p65
        %p203 = pneg %p62
        %p204 = pneg %p86
        %p205 = pneg %p83
        %p206 = pneg %p107
        %p207 = pneg %p104
        %p208 = pneg %p135
        %p209 = pneg %p132
        %s210 = sand.u32 %s122, 1
        %s211 = scalar_lea.sflag [#allocation8], %s210
        %s212 = sand.u32 %s122, 1
        %s213 = smul.addr %s212, 32
        %s214 = scalar_lea.vmem [#allocation9], %s213
        %s215 = smul.u32 4, %s37
        %s216 = smul.u32 %s37, 10
        %s217 = sld [smem:[#allocation4 + %s216]]
        %s218 = sld [smem:[#allocation5 + %s216]]
        %s219 = scalar_lea.vmem %s192, %s217 [#allocation6]
        %v220 = vld [vmem:[%s219] sm:$0x1]
        %v221 = vld [vmem:[%s219 + $0x10] sm:$0x1]
        %v222 = vld [vmem:[%s219 + $0x20] sm:$0x1]
        %v223 = vld [vmem:[%s219 + $0x30] sm:$0x1]
        %v224 = vlaneseq
        %v225 = vshrl.u32 %v224, 7
        %v226 = vsub.s32 0, %v225
        %v227 = vrot.slane %v220, %v226
        %v228 = vlaneseq
        %v229 = vshrl.u32 %v228, 7
        %v230 = vsub.s32 0, %v229
        %v231 = vrot.slane %v221, %v230
        %v232 = vlaneseq
        %v233 = vshrl.u32 %v232, 7
        %v234 = vsub.s32 0, %v233
        %v235 = vrot.slane %v222, %v234
        %v236 = vlaneseq
        %v237 = vshrl.u32 %v236, 7
        %v238 = vsub.s32 0, %v237
        %v239 = vrot.slane %v223, %v238
        %s240 = scalar_lea.vmem [#allocation2], %s218
        %vm241 = vcmask 271360
        %242 = vst.msk [vmem:[%s240] sm:$0x3] %vm241, %v227
        %243 = vst.msk [vmem:[%s240 + $0x18] sm:$0x3] %vm241, %v231
        %244 = vst.msk [vmem:[%s240 + $0x30] sm:$0x3] %vm241, %v235
        %245 = vst.msk [vmem:[%s240 + $0x48] sm:$0x3] %vm241, %v239
        %s246 = sadd.s32 %s216, 1
        %s247 = sld [smem:[#allocation4 + %s246]]
        %s248 = sld [smem:[#allocation5 + %s246]]
        %s249 = scalar_lea.vmem %s192, %s247 [#allocation6]
        %v250 = vld [vmem:[%s249] sm:$0x1]
        %v251 = vld [vmem:[%s249 + $0x10] sm:$0x1]
        %v252 = vld [vmem:[%s249 + $0x20] sm:$0x1]
        %v253 = vld [vmem:[%s249 + $0x30] sm:$0x1]
        %v254 = vlaneseq
        %v255 = vshrl.u32 %v254, 7
        %v256 = vsub.s32 0, %v255
        %v257 = vrot.slane %v250, %v256
        %v258 = vlaneseq
        %v259 = vshrl.u32 %v258, 7
        %v260 = vsub.s32 0, %v259
        %v261 = vrot.slane %v251, %v260
        %v262 = vlaneseq
        %v263 = vshrl.u32 %v262, 7
        %v264 = vsub.s32 0, %v263
        %v265 = vrot.slane %v252, %v264
        %v266 = vlaneseq
        %v267 = vshrl.u32 %v266, 7
        %v268 = vsub.s32 0, %v267
        %v269 = vrot.slane %v253, %v268
        %s270 = scalar_lea.vmem [#allocation2], %s248
        %271 = vst.msk [vmem:[%s270] sm:$0x3] %vm241, %v257
        %272 = vst.msk [vmem:[%s270 + $0x18] sm:$0x3] %vm241, %v261
        %273 = vst.msk [vmem:[%s270 + $0x30] sm:$0x3] %vm241, %v265
        %274 = vst.msk [vmem:[%s270 + $0x48] sm:$0x3] %vm241, %v269
        %s275 = sadd.s32 %s216, 2
        %s276 = sld [smem:[#allocation4 + %s275]]
        %s277 = sld [smem:[#allocation5 + %s275]]
        %s278 = scalar_lea.vmem %s192, %s276 [#allocation6]
        %v279 = vld [vmem:[%s278] sm:$0x1]
        %v280 = vld [vmem:[%s278 + $0x10] sm:$0x1]
        %v281 = vld [vmem:[%s278 + $0x20] sm:$0x1]
        %v282 = vld [vmem:[%s278 + $0x30] sm:$0x1]
        %v283 = vlaneseq
        %v284 = vshrl.u32 %v283, 7
        %v285 = vsub.s32 0, %v284
        %v286 = vrot.slane %v279, %v285
        %v287 = vlaneseq
        %v288 = vshrl.u32 %v287, 7
        %v289 = vsub.s32 0, %v288
        %v290 = vrot.slane %v280, %v289
        %v291 = vlaneseq
        %v292 = vshrl.u32 %v291, 7
        %v293 = vsub.s32 0, %v292
        %v294 = vrot.slane %v281, %v293
        %v295 = vlaneseq
        %v296 = vshrl.u32 %v295, 7
        %v297 = vsub.s32 0, %v296
        %v298 = vrot.slane %v282, %v297
        %s299 = scalar_lea.vmem [#allocation2], %s277
        %300 = vst.msk [vmem:[%s299] sm:$0x3] %vm241, %v286
        %301 = vst.msk [vmem:[%s299 + $0x18] sm:$0x3] %vm241, %v290
        %302 = vst.msk [vmem:[%s299 + $0x30] sm:$0x3] %vm241, %v294
        %303 = vst.msk [vmem:[%s299 + $0x48] sm:$0x3] %vm241, %v298
        %s304 = sadd.s32 %s216, 3
        %s305 = sld [smem:[#allocation4 + %s304]]
        %s306 = sld [smem:[#allocation5 + %s304]]
        %s307 = scalar_lea.vmem %s192, %s305 [#allocation6]
        %v308 = vld [vmem:[%s307] sm:$0x1]
        %v309 = vld [vmem:[%s307 + $0x10] sm:$0x1]
        %v310 = vld [vmem:[%s307 + $0x20] sm:$0x1]
        %v311 = vld [vmem:[%s307 + $0x30] sm:$0x1]
        %v312 = vlaneseq
        %v313 = vshrl.u32 %v312, 7
        %v314 = vsub.s32 0, %v313
        %v315 = vrot.slane %v308, %v314
        %v316 = vlaneseq
        %v317 = vshrl.u32 %v316, 7
        %v318 = vsub.s32 0, %v317
        %v319 = vrot.slane %v309, %v318
        %v320 = vlaneseq
        %v321 = vshrl.u32 %v320, 7
        %v322 = vsub.s32 0, %v321
        %v323 = vrot.slane %v310, %v322
        %v324 = vlaneseq
        %v325 = vshrl.u32 %v324, 7
        %v326 = vsub.s32 0, %v325
        %v327 = vrot.slane %v311, %v326
        %s328 = scalar_lea.vmem [#allocation2], %s306
        %329 = vst.msk [vmem:[%s328] sm:$0x3] %vm241, %v315
        %330 = vst.msk [vmem:[%s328 + $0x18] sm:$0x3] %vm241, %v319
        %331 = vst.msk [vmem:[%s328 + $0x30] sm:$0x3] %vm241, %v323
        %332 = vst.msk [vmem:[%s328 + $0x48] sm:$0x3] %vm241, %v327
        %s333 = sadd.s32 %s216, 4
        %s334 = sld [smem:[#allocation4 + %s333]]
        %s335 = sld [smem:[#allocation5 + %s333]]
        %s336 = scalar_lea.vmem %s192, %s334 [#allocation6]
        %v337 = vld [vmem:[%s336] sm:$0x1]
        %v338 = vld [vmem:[%s336 + $0x10] sm:$0x1]
        %v339 = vld [vmem:[%s336 + $0x20] sm:$0x1]
        %v340 = vld [vmem:[%s336 + $0x30] sm:$0x1]
        %v341 = vlaneseq
        %v342 = vshrl.u32 %v341, 7
        %v343 = vsub.s32 0, %v342
        %v344 = vrot.slane %v337, %v343
        %v345 = vlaneseq
        %v346 = vshrl.u32 %v345, 7
        %v347 = vsub.s32 0, %v346
        %v348 = vrot.slane %v338, %v347
        %v349 = vlaneseq
        %v350 = vshrl.u32 %v349, 7
        %v351 = vsub.s32 0, %v350
        %v352 = vrot.slane %v339, %v351
        %v353 = vlaneseq
        %v354 = vshrl.u32 %v353, 7
        %v355 = vsub.s32 0, %v354
        %v356 = vrot.slane %v340, %v355
        %s357 = scalar_lea.vmem [#allocation2], %s335
        %358 = vst.msk [vmem:[%s357] sm:$0x3] %vm241, %v344
        %359 = vst.msk [vmem:[%s357 + $0x18] sm:$0x3] %vm241, %v348
        %360 = vst.msk [vmem:[%s357 + $0x30] sm:$0x3] %vm241, %v352
        %361 = vst.msk [vmem:[%s357 + $0x48] sm:$0x3] %vm241, %v356
        %s362 = sadd.s32 %s216, 5
        %s363 = sld [smem:[#allocation4 + %s362]]
        %s364 = sld [smem:[#allocation5 + %s362]]
        %s365 = scalar_lea.vmem %s192, %s363 [#allocation6]
        %v366 = vld [vmem:[%s365] sm:$0x1]
        %v367 = vld [vmem:[%s365 + $0x10] sm:$0x1]
        %v368 = vld [vmem:[%s365 + $0x20] sm:$0x1]
        %v369 = vld [vmem:[%s365 + $0x30] sm:$0x1]
        %v370 = vlaneseq
        %v371 = vshrl.u32 %v370, 7
        %v372 = vsub.s32 0, %v371
        %v373 = vrot.slane %v366, %v372
        %v374 = vlaneseq
        %v375 = vshrl.u32 %v374, 7
        %v376 = vsub.s32 0, %v375
        %v377 = vrot.slane %v367, %v376
        %v378 = vlaneseq
        %v379 = vshrl.u32 %v378, 7
        %v380 = vsub.s32 0, %v379
        %v381 = vrot.slane %v368, %v380
        %v382 = vlaneseq
        %v383 = vshrl.u32 %v382, 7
        %v384 = vsub.s32 0, %v383
        %v385 = vrot.slane %v369, %v384
        %s386 = scalar_lea.vmem [#allocation2], %s364
        %387 = vst.msk [vmem:[%s386] sm:$0x3] %vm241, %v373
        %388 = vst.msk [vmem:[%s386 + $0x18] sm:$0x3] %vm241, %v377
        %389 = vst.msk [vmem:[%s386 + $0x30] sm:$0x3] %vm241, %v381
        %390 = vst.msk [vmem:[%s386 + $0x48] sm:$0x3] %vm241, %v385
        %s391 = sadd.s32 %s216, 6
        %s392 = sld [smem:[#allocation4 + %s391]]
        %s393 = sld [smem:[#allocation5 + %s391]]
        %s394 = scalar_lea.vmem %s192, %s392 [#allocation6]
        %v395 = vld [vmem:[%s394] sm:$0x1]
        %v396 = vld [vmem:[%s394 + $0x10] sm:$0x1]
        %v397 = vld [vmem:[%s394 + $0x20] sm:$0x1]
        %v398 = vld [vmem:[%s394 + $0x30] sm:$0x1]
        %v399 = vlaneseq
        %v400 = vshrl.u32 %v399, 7
        %v401 = vsub.s32 0, %v400
        %v402 = vrot.slane %v395, %v401
        %v403 = vlaneseq
        %v404 = vshrl.u32 %v403, 7
        %v405 = vsub.s32 0, %v404
        %v406 = vrot.slane %v396, %v405
        %v407 = vlaneseq
        %v408 = vshrl.u32 %v407, 7
        %v409 = vsub.s32 0, %v408
        %v410 = vrot.slane %v397, %v409
        %v411 = vlaneseq
        %v412 = vshrl.u32 %v411, 7
        %v413 = vsub.s32 0, %v412
        %v414 = vrot.slane %v398, %v413
        %s415 = scalar_lea.vmem [#allocation2], %s393
        %416 = vst.msk [vmem:[%s415] sm:$0x3] %vm241, %v402
        %417 = vst.msk [vmem:[%s415 + $0x18] sm:$0x3] %vm241, %v406
        %418 = vst.msk [vmem:[%s415 + $0x30] sm:$0x3] %vm241, %v410
        %419 = vst.msk [vmem:[%s415 + $0x48] sm:$0x3] %vm241, %v414
        %s420 = sadd.s32 %s216, 7
        %s421 = sld [smem:[#allocation4 + %s420]]
        %s422 = sld [smem:[#allocation5 + %s420]]
        %s423 = scalar_lea.vmem %s192, %s421 [#allocation6]
        %v424 = vld [vmem:[%s423] sm:$0x1]
        %v425 = vld [vmem:[%s423 + $0x10] sm:$0x1]
        %v426 = vld [vmem:[%s423 + $0x20] sm:$0x1]
        %v427 = vld [vmem:[%s423 + $0x30] sm:$0x1]
        %v428 = vlaneseq
        %v429 = vshrl.u32 %v428, 7
        %v430 = vsub.s32 0, %v429
        %v431 = vrot.slane %v424, %v430
        %v432 = vlaneseq
        %v433 = vshrl.u32 %v432, 7
        %v434 = vsub.s32 0, %v433
        %v435 = vrot.slane %v425, %v434
        %v436 = vlaneseq
        %v437 = vshrl.u32 %v436, 7
        %v438 = vsub.s32 0, %v437
        %v439 = vrot.slane %v426, %v438
        %v440 = vlaneseq
        %v441 = vshrl.u32 %v440, 7
        %v442 = vsub.s32 0, %v441
        %v443 = vrot.slane %v427, %v442
        %s444 = scalar_lea.vmem [#allocation2], %s422
        %445 = vst.msk [vmem:[%s444] sm:$0x3] %vm241, %v431
        %446 = vst.msk [vmem:[%s444 + $0x18] sm:$0x3] %vm241, %v435
        %447 = vst.msk [vmem:[%s444 + $0x30] sm:$0x3] %vm241, %v439
        %448 = vst.msk [vmem:[%s444 + $0x48] sm:$0x3] %vm241, %v443
        %s449 = sadd.s32 %s216, 8
        %s450 = sld [smem:[#allocation4 + %s449]]
        %s451 = sld [smem:[#allocation5 + %s449]]
        %s452 = scalar_lea.vmem %s192, %s450 [#allocation6]
        %v453 = vld [vmem:[%s452] sm:$0x1]
        %v454 = vld [vmem:[%s452 + $0x10] sm:$0x1]
        %v455 = vld [vmem:[%s452 + $0x20] sm:$0x1]
        %v456 = vld [vmem:[%s452 + $0x30] sm:$0x1]
        %v457 = vlaneseq
        %v458 = vshrl.u32 %v457, 7
        %v459 = vsub.s32 0, %v458
        %v460 = vrot.slane %v453, %v459
        %v461 = vlaneseq
        %v462 = vshrl.u32 %v461, 7
        %v463 = vsub.s32 0, %v462
        %v464 = vrot.slane %v454, %v463
        %v465 = vlaneseq
        %v466 = vshrl.u32 %v465, 7
        %v467 = vsub.s32 0, %v466
        %v468 = vrot.slane %v455, %v467
        %v469 = vlaneseq
        %v470 = vshrl.u32 %v469, 7
        %v471 = vsub.s32 0, %v470
        %v472 = vrot.slane %v456, %v471
        %s473 = scalar_lea.vmem [#allocation2], %s451
        %474 = vst.msk [vmem:[%s473] sm:$0x3] %vm241, %v460
        %475 = vst.msk [vmem:[%s473 + $0x18] sm:$0x3] %vm241, %v464
        %476 = vst.msk [vmem:[%s473 + $0x30] sm:$0x3] %vm241, %v468
        %477 = vst.msk [vmem:[%s473 + $0x48] sm:$0x3] %vm241, %v472
        %s478 = sadd.s32 %s216, 9
        %s479 = sld [smem:[#allocation4 + %s478]]
        %s480 = sld [smem:[#allocation5 + %s478]]
        %s481 = scalar_lea.vmem %s192, %s479 [#allocation6]
        %v482 = vld [vmem:[%s481] sm:$0x1]
        %v483 = vld [vmem:[%s481 + $0x10] sm:$0x1]
        %v484 = vld [vmem:[%s481 + $0x20] sm:$0x1]
        %v485 = vld [vmem:[%s481 + $0x30] sm:$0x1]
        %v486 = vlaneseq
        %v487 = vshrl.u32 %v486, 7
        %v488 = vsub.s32 0, %v487
        %v489 = vrot.slane %v482, %v488
        %v490 = vlaneseq
        %v491 = vshrl.u32 %v490, 7
        %v492 = vsub.s32 0, %v491
        %v493 = vrot.slane %v483, %v492
        %v494 = vlaneseq
        %v495 = vshrl.u32 %v494, 7
        %v496 = vsub.s32 0, %v495
        %v497 = vrot.slane %v484, %v496
        %v498 = vlaneseq
        %v499 = vshrl.u32 %v498, 7
        %v500 = vsub.s32 0, %v499
        %v501 = vrot.slane %v485, %v500
        %s502 = scalar_lea.vmem [#allocation2], %s480
        %503 = vst.msk [vmem:[%s502] sm:$0x3] %vm241, %v489
        %504 = vst.msk [vmem:[%s502 + $0x18] sm:$0x3] %vm241, %v493
        %505 = vst.msk [vmem:[%s502 + $0x30] sm:$0x3] %vm241, %v497
        %506 = vst.msk [vmem:[%s502 + $0x48] sm:$0x3] %vm241, %v501
        %v507 = vld [vmem:[#allocation2] sm:$0xff]
        %v508 = vld [vmem:[#allocation2 + $0x8] sm:$0xff]
        %v509 = vld [vmem:[#allocation2 + $0x18] sm:$0xff]
        %v510 = vld [vmem:[#allocation2 + $0x20] sm:$0xff]
        %v511 = vld [vmem:[#allocation2 + $0x30] sm:$0xff]
        %v512 = vld [vmem:[#allocation2 + $0x38] sm:$0xff]
        %v513 = vld [vmem:[#allocation2 + $0x48] sm:$0xff]
        %v514 = vld [vmem:[#allocation2 + $0x50] sm:$0xff]
        %v515 = vld [vmem:[#allocation2 + $0x1] sm:$0xff]
        %v516 = vld [vmem:[#allocation2 + $0x9] sm:$0xff]
        %v517 = vld [vmem:[#allocation2 + $0x19] sm:$0xff]
        %v518 = vld [vmem:[#allocation2 + $0x21] sm:$0xff]
        %v519 = vld [vmem:[#allocation2 + $0x31] sm:$0xff]
        %v520 = vld [vmem:[#allocation2 + $0x39] sm:$0xff]
        %v521 = vld [vmem:[#allocation2 + $0x49] sm:$0xff]
        %v522 = vld [vmem:[#allocation2 + $0x51] sm:$0xff]
        %v523 = vld [vmem:[#allocation2 + $0x2] sm:$0xff]
        %v524 = vld [vmem:[#allocation2 + $0xa] sm:$0xff]
        %v525 = vld [vmem:[#allocation2 + $0x1a] sm:$0xff]
        %v526 = vld [vmem:[#allocation2 + $0x22] sm:$0xff]
        %v527 = vld [vmem:[#allocation2 + $0x32] sm:$0xff]
        %v528 = vld [vmem:[#allocation2 + $0x3a] sm:$0xff]
        %v529 = vld [vmem:[#allocation2 + $0x4a] sm:$0xff]
        %v530 = vld [vmem:[#allocation2 + $0x52] sm:$0xff]
        %539 = vrot.lane.b32.xlu0 %v507, 127
        %v540 = vpop.permute.xlu0 %539
        %541 = vrot.lane.b32.xlu0 %v508, 127
        %v542 = vpop.permute.xlu0 %541
        %543 = vrot.lane.b32.xlu0 %v509, 127
        %v544 = vpop.permute.xlu0 %543
        %545 = vrot.lane.b32.xlu0 %v510, 127
        %v546 = vpop.permute.xlu0 %545
        %547 = vrot.lane.b32.xlu0 %v511, 127
        %v548 = vpop.permute.xlu0 %547
        %549 = vrot.lane.b32.xlu0 %v512, 127
        %v550 = vpop.permute.xlu0 %549
        %551 = vrot.lane.b32.xlu0 %v513, 127
        %v552 = vpop.permute.xlu0 %551
        %553 = vrot.lane.b32.xlu0 %v514, 127
        %v554 = vpop.permute.xlu0 %553
        %563 = vrot.lane.b32.xlu0 %v507, 126
        %v564 = vpop.permute.xlu0 %563
        %565 = vrot.lane.b32.xlu0 %v508, 126
        %v566 = vpop.permute.xlu0 %565
        %567 = vrot.lane.b32.xlu0 %v509, 126
        %v568 = vpop.permute.xlu0 %567
        %569 = vrot.lane.b32.xlu0 %v510, 126
        %v570 = vpop.permute.xlu0 %569
        %571 = vrot.lane.b32.xlu0 %v511, 126
        %v572 = vpop.permute.xlu0 %571
        %573 = vrot.lane.b32.xlu0 %v512, 126
        %v574 = vpop.permute.xlu0 %573
        %575 = vrot.lane.b32.xlu0 %v513, 126
        %v576 = vpop.permute.xlu0 %575
        %577 = vrot.lane.b32.xlu0 %v514, 126
        %v578 = vpop.permute.xlu0 %577
        %595 = vrot.lane.b32.xlu0 %v515, 127
        %v596 = vpop.permute.xlu0 %595
        %597 = vrot.lane.b32.xlu0 %v516, 127
        %v598 = vpop.permute.xlu0 %597
        %599 = vrot.lane.b32.xlu0 %v517, 127
        %v600 = vpop.permute.xlu0 %599
        %601 = vrot.lane.b32.xlu0 %v518, 127
        %v602 = vpop.permute.xlu0 %601
        %603 = vrot.lane.b32.xlu0 %v519, 127
        %v604 = vpop.permute.xlu0 %603
        %605 = vrot.lane.b32.xlu0 %v520, 127
        %v606 = vpop.permute.xlu0 %605
        %607 = vrot.lane.b32.xlu0 %v521, 127
        %v608 = vpop.permute.xlu0 %607
        %609 = vrot.lane.b32.xlu0 %v522, 127
        %v610 = vpop.permute.xlu0 %609
        %619 = vrot.lane.b32.xlu0 %v515, 126
        %v620 = vpop.permute.xlu0 %619
        %621 = vrot.lane.b32.xlu0 %v516, 126
        %v622 = vpop.permute.xlu0 %621
        %623 = vrot.lane.b32.xlu0 %v517, 126
        %v624 = vpop.permute.xlu0 %623
        %625 = vrot.lane.b32.xlu0 %v518, 126
        %v626 = vpop.permute.xlu0 %625
        %627 = vrot.lane.b32.xlu0 %v519, 126
        %v628 = vpop.permute.xlu0 %627
        %629 = vrot.lane.b32.xlu0 %v520, 126
        %v630 = vpop.permute.xlu0 %629
        %631 = vrot.lane.b32.xlu0 %v521, 126
        %v632 = vpop.permute.xlu0 %631
        %633 = vrot.lane.b32.xlu0 %v522, 126
        %v634 = vpop.permute.xlu0 %633
        %651 = vrot.lane.b32.xlu0 %v523, 127
        %v652 = vpop.permute.xlu0 %651
        %653 = vrot.lane.b32.xlu0 %v524, 127
        %v654 = vpop.permute.xlu0 %653
        %655 = vrot.lane.b32.xlu0 %v525, 127
        %v656 = vpop.permute.xlu0 %655
        %657 = vrot.lane.b32.xlu0 %v526, 127
        %v658 = vpop.permute.xlu0 %657
        %659 = vrot.lane.b32.xlu0 %v527, 127
        %v660 = vpop.permute.xlu0 %659
        %661 = vrot.lane.b32.xlu0 %v528, 127
        %v662 = vpop.permute.xlu0 %661
        %663 = vrot.lane.b32.xlu0 %v529, 127
        %v664 = vpop.permute.xlu0 %663
        %665 = vrot.lane.b32.xlu0 %v530, 127
        %v666 = vpop.permute.xlu0 %665
        %675 = vrot.lane.b32.xlu0 %v523, 126
        %v676 = vpop.permute.xlu0 %675
        %677 = vrot.lane.b32.xlu0 %v524, 126
        %v678 = vpop.permute.xlu0 %677
        %679 = vrot.lane.b32.xlu0 %v525, 126
        %v680 = vpop.permute.xlu0 %679
        %681 = vrot.lane.b32.xlu0 %v526, 126
        %v682 = vpop.permute.xlu0 %681
        %683 = vrot.lane.b32.xlu0 %v527, 126
        %v684 = vpop.permute.xlu0 %683
        %685 = vrot.lane.b32.xlu0 %v528, 126
        %v686 = vpop.permute.xlu0 %685
        %687 = vrot.lane.b32.xlu0 %v529, 126
        %v688 = vpop.permute.xlu0 %687
        %689 = vrot.lane.b32.xlu0 %v530, 126
        %v690 = vpop.permute.xlu0 %689
        %v699 = vcombine.low %v507, %v511
        %v700 = vcombine.high %v507, %v511
        %v702 = vunpack.c.l.s4 1983009808
        %v703 = vunpack.c.0.s8 %v702
        %v704 = vlaneseq
        %v705 = vshrl.u32 %v704, 7
        %v706 = vsub.s32 %v703, %v705
        %v707 = vrot.slane %v699, %v706
        %v709 = vunpack.c.l.s4 1983009808
        %v710 = vunpack.c.0.s8 %v709
        %v711 = vlaneseq
        %v712 = vshrl.u32 %v711, 7
        %v713 = vsub.s32 %v710, %v712
        %v714 = vrot.slane %v700, %v713
        %v715 = vcombine.low %v509, %v513
        %v716 = vcombine.high %v509, %v513
        %v718 = vunpack.c.l.s4 1983009808
        %v719 = vunpack.c.0.s8 %v718
        %v720 = vlaneseq
        %v721 = vshrl.u32 %v720, 7
        %v722 = vsub.s32 %v719, %v721
        %v723 = vrot.slane %v715, %v722
        %v725 = vunpack.c.l.s4 1983009808
        %v726 = vunpack.c.0.s8 %v725
        %v727 = vlaneseq
        %v728 = vshrl.u32 %v727, 7
        %v729 = vsub.s32 %v726, %v728
        %v730 = vrot.slane %v716, %v729
        %v731 = vcombine.low %v540, %v548
        %v732 = vcombine.high %v540, %v548
        %v734 = vunpack.c.l.s4 1983009808
        %v735 = vunpack.c.0.s8 %v734
        %v736 = vlaneseq
        %v737 = vshrl.u32 %v736, 7
        %v738 = vsub.s32 %v735, %v737
        %v739 = vrot.slane %v731, %v738
        %v741 = vunpack.c.l.s4 1983009808
        %v742 = vunpack.c.0.s8 %v741
        %v743 = vlaneseq
        %v744 = vshrl.u32 %v743, 7
        %v745 = vsub.s32 %v742, %v744
        %v746 = vrot.slane %v732, %v745
        %v747 = vcombine.low %v544, %v552
        %v748 = vcombine.high %v544, %v552
        %v750 = vunpack.c.l.s4 1983009808
        %v751 = vunpack.c.0.s8 %v750
        %v752 = vlaneseq
        %v753 = vshrl.u32 %v752, 7
        %v754 = vsub.s32 %v751, %v753
        %v755 = vrot.slane %v747, %v754
        %v757 = vunpack.c.l.s4 1983009808
        %v758 = vunpack.c.0.s8 %v757
        %v759 = vlaneseq
        %v760 = vshrl.u32 %v759, 7
        %v761 = vsub.s32 %v758, %v760
        %v762 = vrot.slane %v748, %v761
        %v763 = vcombine.low %v707, %v723
        %v764 = vcombine.high %v707, %v723
        %v766 = vunpack.c.l.s4 1934713408
        %v767 = vunpack.c.0.s8 %v766
        %v768 = vlaneseq
        %v769 = vshrl.u32 %v768, 7
        %v770 = vsub.s32 %v767, %v769
        %v771 = vrot.slane %v763, %v770
        %v773 = vunpack.c.l.s4 1934713408
        %v774 = vunpack.c.0.s8 %v773
        %v775 = vlaneseq
        %v776 = vshrl.u32 %v775, 7
        %v777 = vsub.s32 %v774, %v776
        %v778 = vrot.slane %v764, %v777
        %v779 = vcombine.low %v714, %v730
        %v780 = vcombine.high %v714, %v730
        %v782 = vunpack.c.l.s4 1934713408
        %v783 = vunpack.c.0.s8 %v782
        %v784 = vlaneseq
        %v785 = vshrl.u32 %v784, 7
        %v786 = vsub.s32 %v783, %v785
        %v787 = vrot.slane %v779, %v786
        %v789 = vunpack.c.l.s4 1934713408
        %v790 = vunpack.c.0.s8 %v789
        %v791 = vlaneseq
        %v792 = vshrl.u32 %v791, 7
        %v793 = vsub.s32 %v790, %v792
        %v794 = vrot.slane %v780, %v793
        %v795 = vcombine.low %v739, %v755
        %v796 = vcombine.high %v739, %v755
        %v798 = vunpack.c.l.s4 1934713408
        %v799 = vunpack.c.0.s8 %v798
        %v800 = vlaneseq
        %v801 = vshrl.u32 %v800, 7
        %v802 = vsub.s32 %v799, %v801
        %v803 = vrot.slane %v795, %v802
        %v805 = vunpack.c.l.s4 1934713408
        %v806 = vunpack.c.0.s8 %v805
        %v807 = vlaneseq
        %v808 = vshrl.u32 %v807, 7
        %v809 = vsub.s32 %v806, %v808
        %v810 = vrot.slane %v796, %v809
        %v811 = vcombine.low %v746, %v762
        %v812 = vcombine.high %v746, %v762
        %v814 = vunpack.c.l.s4 1934713408
        %v815 = vunpack.c.0.s8 %v814
        %v816 = vlaneseq
        %v817 = vshrl.u32 %v816, 7
        %v818 = vsub.s32 %v815, %v817
        %v819 = vrot.slane %v811, %v818
        %v821 = vunpack.c.l.s4 1934713408
        %v822 = vunpack.c.0.s8 %v821
        %v823 = vlaneseq
        %v824 = vshrl.u32 %v823, 7
        %v825 = vsub.s32 %v822, %v824
        %v826 = vrot.slane %v812, %v825
        %v827 = vcombine.low %v771, %v803
        %v828 = vcombine.high %v771, %v803
        %v829 = vcombine.low %v778, %v810
        %v830 = vcombine.high %v778, %v810
        %v831 = vcombine.low %v787, %v819
        %v832 = vcombine.high %v787, %v819
        %v833 = vcombine.low %v794, %v826
        %v834 = vcombine.high %v794, %v826
        %v835 = vcombine.low %v564, %v572
        %v836 = vcombine.high %v564, %v572
        %v838 = vunpack.c.l.s4 1983009808
        %v839 = vunpack.c.0.s8 %v838
        %v840 = vlaneseq
        %v841 = vshrl.u32 %v840, 7
        %v842 = vsub.s32 %v839, %v841
        %v843 = vrot.slane %v835, %v842
        %v845 = vunpack.c.l.s4 1983009808
        %v846 = vunpack.c.0.s8 %v845
        %v847 = vlaneseq
        %v848 = vshrl.u32 %v847, 7
        %v849 = vsub.s32 %v846, %v848
        %v850 = vrot.slane %v836, %v849
        %v851 = vcombine.low %v568, %v576
        %v852 = vcombine.high %v568, %v576
        %v854 = vunpack.c.l.s4 1983009808
        %v855 = vunpack.c.0.s8 %v854
        %v856 = vlaneseq
        %v857 = vshrl.u32 %v856, 7
        %v858 = vsub.s32 %v855, %v857
        %v859 = vrot.slane %v851, %v858
        %v861 = vunpack.c.l.s4 1983009808
        %v862 = vunpack.c.0.s8 %v861
        %v863 = vlaneseq
        %v864 = vshrl.u32 %v863, 7
        %v865 = vsub.s32 %v862, %v864
        %v866 = vrot.slane %v852, %v865
        %v867 = vcombine.low %v515, %v519
        %v868 = vcombine.high %v515, %v519
        %v870 = vunpack.c.l.s4 1983009808
        %v871 = vunpack.c.0.s8 %v870
        %v872 = vlaneseq
        %v873 = vshrl.u32 %v872, 7
        %v874 = vsub.s32 %v871, %v873
        %v875 = vrot.slane %v867, %v874
        %v877 = vunpack.c.l.s4 1983009808
        %v878 = vunpack.c.0.s8 %v877
        %v879 = vlaneseq
        %v880 = vshrl.u32 %v879, 7
        %v881 = vsub.s32 %v878, %v880
        %v882 = vrot.slane %v868, %v881
        %v883 = vcombine.low %v517, %v521
        %v884 = vcombine.high %v517, %v521
        %v886 = vunpack.c.l.s4 1983009808
        %v887 = vunpack.c.0.s8 %v886
        %v888 = vlaneseq
        %v889 = vshrl.u32 %v888, 7
        %v890 = vsub.s32 %v887, %v889
        %v891 = vrot.slane %v883, %v890
        %v893 = vunpack.c.l.s4 1983009808
        %v894 = vunpack.c.0.s8 %v893
        %v895 = vlaneseq
        %v896 = vshrl.u32 %v895, 7
        %v897 = vsub.s32 %v894, %v896
        %v898 = vrot.slane %v884, %v897
        %v899 = vcombine.low %v843, %v859
        %v900 = vcombine.high %v843, %v859
        %v902 = vunpack.c.l.s4 1934713408
        %v903 = vunpack.c.0.s8 %v902
        %v904 = vlaneseq
        %v905 = vshrl.u32 %v904, 7
        %v906 = vsub.s32 %v903, %v905
        %v907 = vrot.slane %v899, %v906
        %v909 = vunpack.c.l.s4 1934713408
        %v910 = vunpack.c.0.s8 %v909
        %v911 = vlaneseq
        %v912 = vshrl.u32 %v911, 7
        %v913 = vsub.s32 %v910, %v912
        %v914 = vrot.slane %v900, %v913
        %v915 = vcombine.low %v850, %v866
        %v916 = vcombine.high %v850, %v866
        %v918 = vunpack.c.l.s4 1934713408
        %v919 = vunpack.c.0.s8 %v918
        %v920 = vlaneseq
        %v921 = vshrl.u32 %v920, 7
        %v922 = vsub.s32 %v919, %v921
        %v923 = vrot.slane %v915, %v922
        %v925 = vunpack.c.l.s4 1934713408
        %v926 = vunpack.c.0.s8 %v925
        %v927 = vlaneseq
        %v928 = vshrl.u32 %v927, 7
        %v929 = vsub.s32 %v926, %v928
        %v930 = vrot.slane %v916, %v929
        %v931 = vcombine.low %v875, %v891
        %v932 = vcombine.high %v875, %v891
        %v934 = vunpack.c.l.s4 1934713408
        %v935 = vunpack.c.0.s8 %v934
        %v936 = vlaneseq
        %v937 = vshrl.u32 %v936, 7
        %v938 = vsub.s32 %v935, %v937
        %v939 = vrot.slane %v931, %v938
        %v941 = vunpack.c.l.s4 1934713408
        %v942 = vunpack.c.0.s8 %v941
        %v943 = vlaneseq
        %v944 = vshrl.u32 %v943, 7
        %v945 = vsub.s32 %v942, %v944
        %v946 = vrot.slane %v932, %v945
        %v947 = vcombine.low %v882, %v898
        %v948 = vcombine.high %v882, %v898
        %v950 = vunpack.c.l.s4 1934713408
        %v951 = vunpack.c.0.s8 %v950
        %v952 = vlaneseq
        %v953 = vshrl.u32 %v952, 7
        %v954 = vsub.s32 %v951, %v953
        %v955 = vrot.slane %v947, %v954
        %v957 = vunpack.c.l.s4 1934713408
        %v958 = vunpack.c.0.s8 %v957
        %v959 = vlaneseq
        %v960 = vshrl.u32 %v959, 7
        %v961 = vsub.s32 %v958, %v960
        %v962 = vrot.slane %v948, %v961
        %v963 = vcombine.low %v907, %v939
        %v964 = vcombine.high %v907, %v939
        %v965 = vcombine.low %v914, %v946
        %v966 = vcombine.high %v914, %v946
        %v967 = vcombine.low %v923, %v955
        %v968 = vcombine.high %v923, %v955
        %v969 = vcombine.low %v930, %v962
        %v970 = vcombine.high %v930, %v962
        %v971 = vcombine.low %v596, %v604
        %v972 = vcombine.high %v596, %v604
        %v974 = vunpack.c.l.s4 1983009808
        %v975 = vunpack.c.0.s8 %v974
        %v976 = vlaneseq
        %v977 = vshrl.u32 %v976, 7
        %v978 = vsub.s32 %v975, %v977
        %v979 = vrot.slane %v971, %v978
        %v981 = vunpack.c.l.s4 1983009808
        %v982 = vunpack.c.0.s8 %v981
        %v983 = vlaneseq
        %v984 = vshrl.u32 %v983, 7
        %v985 = vsub.s32 %v982, %v984
        %v986 = vrot.slane %v972, %v985
        %v987 = vcombine.low %v600, %v608
        %v988 = vcombine.high %v600, %v608
        %v990 = vunpack.c.l.s4 1983009808
        %v991 = vunpack.c.0.s8 %v990
        %v992 = vlaneseq
        %v993 = vshrl.u32 %v992, 7
        %v994 = vsub.s32 %v991, %v993
        %v995 = vrot.slane %v987, %v994
        %v997 = vunpack.c.l.s4 1983009808
        %v998 = vunpack.c.0.s8 %v997
        %v999 = vlaneseq
        %v1000 = vshrl.u32 %v999, 7
        %v1001 = vsub.s32 %v998, %v1000
        %v1002 = vrot.slane %v988, %v1001
        %v1003 = vcombine.low %v620, %v628
        %v1004 = vcombine.high %v620, %v628
        %v1006 = vunpack.c.l.s4 1983009808
        %v1007 = vunpack.c.0.s8 %v1006
        %v1008 = vlaneseq
        %v1009 = vshrl.u32 %v1008, 7
        %v1010 = vsub.s32 %v1007, %v1009
        %v1011 = vrot.slane %v1003, %v1010
        %v1013 = vunpack.c.l.s4 1983009808
        %v1014 = vunpack.c.0.s8 %v1013
        %v1015 = vlaneseq
        %v1016 = vshrl.u32 %v1015, 7
        %v1017 = vsub.s32 %v1014, %v1016
        %v1018 = vrot.slane %v1004, %v1017
        %v1019 = vcombine.low %v624, %v632
        %v1020 = vcombine.high %v624, %v632
        %v1022 = vunpack.c.l.s4 1983009808
        %v1023 = vunpack.c.0.s8 %v1022
        %v1024 = vlaneseq
        %v1025 = vshrl.u32 %v1024, 7
        %v1026 = vsub.s32 %v1023, %v1025
        %v1027 = vrot.slane %v1019, %v1026
        %v1029 = vunpack.c.l.s4 1983009808
        %v1030 = vunpack.c.0.s8 %v1029
        %v1031 = vlaneseq
        %v1032 = vshrl.u32 %v1031, 7
        %v1033 = vsub.s32 %v1030, %v1032
        %v1034 = vrot.slane %v1020, %v1033
        %v1035 = vcombine.low %v979, %v995
        %v1036 = vcombine.high %v979, %v995
        %v1038 = vunpack.c.l.s4 1934713408
        %v1039 = vunpack.c.0.s8 %v1038
        %v1040 = vlaneseq
        %v1041 = vshrl.u32 %v1040, 7
        %v1042 = vsub.s32 %v1039, %v1041
        %v1043 = vrot.slane %v1035, %v1042
        %v1045 = vunpack.c.l.s4 1934713408
        %v1046 = vunpack.c.0.s8 %v1045
        %v1047 = vlaneseq
        %v1048 = vshrl.u32 %v1047, 7
        %v1049 = vsub.s32 %v1046, %v1048
        %v1050 = vrot.slane %v1036, %v1049
        %v1051 = vcombine.low %v986, %v1002
        %v1052 = vcombine.high %v986, %v1002
        %v1054 = vunpack.c.l.s4 1934713408
        %v1055 = vunpack.c.0.s8 %v1054
        %v1056 = vlaneseq
        %v1057 = vshrl.u32 %v1056, 7
        %v1058 = vsub.s32 %v1055, %v1057
        %v1059 = vrot.slane %v1051, %v1058
        %v1061 = vunpack.c.l.s4 1934713408
        %v1062 = vunpack.c.0.s8 %v1061
        %v1063 = vlaneseq
        %v1064 = vshrl.u32 %v1063, 7
        %v1065 = vsub.s32 %v1062, %v1064
        %v1066 = vrot.slane %v1052, %v1065
        %v1067 = vcombine.low %v1011, %v1027
        %v1068 = vcombine.high %v1011, %v1027
        %v1070 = vunpack.c.l.s4 1934713408
        %v1071 = vunpack.c.0.s8 %v1070
        %v1072 = vlaneseq
        %v1073 = vshrl.u32 %v1072, 7
        %v1074 = vsub.s32 %v1071, %v1073
        %v1075 = vrot.slane %v1067, %v1074
        %v1077 = vunpack.c.l.s4 1934713408
        %v1078 = vunpack.c.0.s8 %v1077
        %v1079 = vlaneseq
        %v1080 = vshrl.u32 %v1079, 7
        %v1081 = vsub.s32 %v1078, %v1080
        %v1082 = vrot.slane %v1068, %v1081
        %v1083 = vcombine.low %v1018, %v1034
        %v1084 = vcombine.high %v1018, %v1034
        %v1086 = vunpack.c.l.s4 1934713408
        %v1087 = vunpack.c.0.s8 %v1086
        %v1088 = vlaneseq
        %v1089 = vshrl.u32 %v1088, 7
        %v1090 = vsub.s32 %v1087, %v1089
        %v1091 = vrot.slane %v1083, %v1090
        %v1093 = vunpack.c.l.s4 1934713408
        %v1094 = vunpack.c.0.s8 %v1093
        %v1095 = vlaneseq
        %v1096 = vshrl.u32 %v1095, 7
        %v1097 = vsub.s32 %v1094, %v1096
        %v1098 = vrot.slane %v1084, %v1097
        %v1099 = vcombine.low %v1043, %v1075
        %v1100 = vcombine.high %v1043, %v1075
        %v1101 = vcombine.low %v1050, %v1082
        %v1102 = vcombine.high %v1050, %v1082
        %v1103 = vcombine.low %v1059, %v1091
        %v1104 = vcombine.high %v1059, %v1091
        %v1105 = vcombine.low %v1066, %v1098
        %v1106 = vcombine.high %v1066, %v1098
        %v1107 = vcombine.low %v523, %v527
        %v1108 = vcombine.high %v523, %v527
        %v1110 = vunpack.c.l.s4 1983009808
        %v1111 = vunpack.c.0.s8 %v1110
        %v1112 = vlaneseq
        %v1113 = vshrl.u32 %v1112, 7
        %v1114 = vsub.s32 %v1111, %v1113
        %v1115 = vrot.slane %v1107, %v1114
        %v1117 = vunpack.c.l.s4 1983009808
        %v1118 = vunpack.c.0.s8 %v1117
        %v1119 = vlaneseq
        %v1120 = vshrl.u32 %v1119, 7
        %v1121 = vsub.s32 %v1118, %v1120
        %v1122 = vrot.slane %v1108, %v1121
        %v1123 = vcombine.low %v525, %v529
        %v1124 = vcombine.high %v525, %v529
        %v1126 = vunpack.c.l.s4 1983009808
        %v1127 = vunpack.c.0.s8 %v1126
        %v1128 = vlaneseq
        %v1129 = vshrl.u32 %v1128, 7
        %v1130 = vsub.s32 %v1127, %v1129
        %v1131 = vrot.slane %v1123, %v1130
        %v1133 = vunpack.c.l.s4 1983009808
        %v1134 = vunpack.c.0.s8 %v1133
        %v1135 = vlaneseq
        %v1136 = vshrl.u32 %v1135, 7
        %v1137 = vsub.s32 %v1134, %v1136
        %v1138 = vrot.slane %v1124, %v1137
        %v1139 = vcombine.low %v652, %v660
        %v1140 = vcombine.high %v652, %v660
        %v1142 = vunpack.c.l.s4 1983009808
        %v1143 = vunpack.c.0.s8 %v1142
        %v1144 = vlaneseq
        %v1145 = vshrl.u32 %v1144, 7
        %v1146 = vsub.s32 %v1143, %v1145
        %v1147 = vrot.slane %v1139, %v1146
        %v1149 = vunpack.c.l.s4 1983009808
        %v1150 = vunpack.c.0.s8 %v1149
        %v1151 = vlaneseq
        %v1152 = vshrl.u32 %v1151, 7
        %v1153 = vsub.s32 %v1150, %v1152
        %v1154 = vrot.slane %v1140, %v1153
        %v1155 = vcombine.low %v656, %v664
        %v1156 = vcombine.high %v656, %v664
        %v1158 = vunpack.c.l.s4 1983009808
        %v1159 = vunpack.c.0.s8 %v1158
        %v1160 = vlaneseq
        %v1161 = vshrl.u32 %v1160, 7
        %v1162 = vsub.s32 %v1159, %v1161
        %v1163 = vrot.slane %v1155, %v1162
        %v1165 = vunpack.c.l.s4 1983009808
        %v1166 = vunpack.c.0.s8 %v1165
        %v1167 = vlaneseq
        %v1168 = vshrl.u32 %v1167, 7
        %v1169 = vsub.s32 %v1166, %v1168
        %v1170 = vrot.slane %v1156, %v1169
        %v1171 = vcombine.low %v1115, %v1131
        %v1172 = vcombine.high %v1115, %v1131
        %v1174 = vunpack.c.l.s4 1934713408
        %v1175 = vunpack.c.0.s8 %v1174
        %v1176 = vlaneseq
        %v1177 = vshrl.u32 %v1176, 7
        %v1178 = vsub.s32 %v1175, %v1177
        %v1179 = vrot.slane %v1171, %v1178
        %v1181 = vunpack.c.l.s4 1934713408
        %v1182 = vunpack.c.0.s8 %v1181
        %v1183 = vlaneseq
        %v1184 = vshrl.u32 %v1183, 7
        %v1185 = vsub.s32 %v1182, %v1184
        %v1186 = vrot.slane %v1172, %v1185
        %v1187 = vcombine.low %v1122, %v1138
        %v1188 = vcombine.high %v1122, %v1138
        %v1190 = vunpack.c.l.s4 1934713408
        %v1191 = vunpack.c.0.s8 %v1190
        %v1192 = vlaneseq
        %v1193 = vshrl.u32 %v1192, 7
        %v1194 = vsub.s32 %v1191, %v1193
        %v1195 = vrot.slane %v1187, %v1194
        %v1197 = vunpack.c.l.s4 1934713408
        %v1198 = vunpack.c.0.s8 %v1197
        %v1199 = vlaneseq
        %v1200 = vshrl.u32 %v1199, 7
        %v1201 = vsub.s32 %v1198, %v1200
        %v1202 = vrot.slane %v1188, %v1201
        %v1203 = vcombine.low %v1147, %v1163
        %v1204 = vcombine.high %v1147, %v1163
        %v1206 = vunpack.c.l.s4 1934713408
        %v1207 = vunpack.c.0.s8 %v1206
        %v1208 = vlaneseq
        %v1209 = vshrl.u32 %v1208, 7
        %v1210 = vsub.s32 %v1207, %v1209
        %v1211 = vrot.slane %v1203, %v1210
        %v1213 = vunpack.c.l.s4 1934713408
        %v1214 = vunpack.c.0.s8 %v1213
        %v1215 = vlaneseq
        %v1216 = vshrl.u32 %v1215, 7
        %v1217 = vsub.s32 %v1214, %v1216
        %v1218 = vrot.slane %v1204, %v1217
        %v1219 = vcombine.low %v1154, %v1170
        %v1220 = vcombine.high %v1154, %v1170
        %v1222 = vunpack.c.l.s4 1934713408
        %v1223 = vunpack.c.0.s8 %v1222
        %v1224 = vlaneseq
        %v1225 = vshrl.u32 %v1224, 7
        %v1226 = vsub.s32 %v1223, %v1225
        %v1227 = vrot.slane %v1219, %v1226
        %v1229 = vunpack.c.l.s4 1934713408
        %v1230 = vunpack.c.0.s8 %v1229
        %v1231 = vlaneseq
        %v1232 = vshrl.u32 %v1231, 7
        %v1233 = vsub.s32 %v1230, %v1232
        %v1234 = vrot.slane %v1220, %v1233
        %v1235 = vcombine.low %v1179, %v1211
        %v1236 = vcombine.high %v1179, %v1211
        %v1237 = vcombine.low %v1186, %v1218
        %v1238 = vcombine.high %v1186, %v1218
        %v1239 = vcombine.low %v1195, %v1227
        %v1240 = vcombine.high %v1195, %v1227
        %v1241 = vcombine.low %v1202, %v1234
        %v1242 = vcombine.high %v1202, %v1234
        %v1243 = vcombine.low %v676, %v684
        %v1244 = vcombine.high %v676, %v684
        %v1246 = vunpack.c.l.s4 1983009808
        %v1247 = vunpack.c.0.s8 %v1246
        %v1248 = vlaneseq
        %v1249 = vshrl.u32 %v1248, 7
        %v1250 = vsub.s32 %v1247, %v1249
        %v1251 = vrot.slane %v1243, %v1250
        %v1253 = vunpack.c.l.s4 1983009808
        %v1254 = vunpack.c.0.s8 %v1253
        %v1255 = vlaneseq
        %v1256 = vshrl.u32 %v1255, 7
        %v1257 = vsub.s32 %v1254, %v1256
        %v1258 = vrot.slane %v1244, %v1257
        %v1259 = vcombine.low %v680, %v688
        %v1260 = vcombine.high %v680, %v688
        %v1262 = vunpack.c.l.s4 1983009808
        %v1263 = vunpack.c.0.s8 %v1262
        %v1264 = vlaneseq
        %v1265 = vshrl.u32 %v1264, 7
        %v1266 = vsub.s32 %v1263, %v1265
        %v1267 = vrot.slane %v1259, %v1266
        %v1269 = vunpack.c.l.s4 1983009808
        %v1270 = vunpack.c.0.s8 %v1269
        %v1271 = vlaneseq
        %v1272 = vshrl.u32 %v1271, 7
        %v1273 = vsub.s32 %v1270, %v1272
        %v1274 = vrot.slane %v1260, %v1273
        %v1275 = vcombine.low %v1251, %v1267
        %v1276 = vcombine.high %v1251, %v1267
        %v1278 = vunpack.c.l.s4 1934713408
        %v1279 = vunpack.c.0.s8 %v1278
        %v1280 = vlaneseq
        %v1281 = vshrl.u32 %v1280, 7
        %v1282 = vsub.s32 %v1279, %v1281
        %v1283 = vrot.slane %v1275, %v1282
        %v1285 = vunpack.c.l.s4 1934713408
        %v1286 = vunpack.c.0.s8 %v1285
        %v1287 = vlaneseq
        %v1288 = vshrl.u32 %v1287, 7
        %v1289 = vsub.s32 %v1286, %v1288
        %v1290 = vrot.slane %v1276, %v1289
        %v1291 = vcombine.low %v1258, %v1274
        %v1292 = vcombine.high %v1258, %v1274
        %v1294 = vunpack.c.l.s4 1934713408
        %v1295 = vunpack.c.0.s8 %v1294
        %v1296 = vlaneseq
        %v1297 = vshrl.u32 %v1296, 7
        %v1298 = vsub.s32 %v1295, %v1297
        %v1299 = vrot.slane %v1291, %v1298
        %v1301 = vunpack.c.l.s4 1934713408
        %v1302 = vunpack.c.0.s8 %v1301
        %v1303 = vlaneseq
        %v1304 = vshrl.u32 %v1303, 7
        %v1305 = vsub.s32 %v1302, %v1304
        %v1306 = vrot.slane %v1292, %v1305
        %v1307 = vcombine.high %v1283, 0.0
        %v1308 = vcombine.high %v1290, 0.0
        %v1309 = vcombine.high %v1299, 0.0
        %v1310 = vcombine.high %v1306, 0.0
        %v1311 = vcombine.low %v508, %v512
        %v1312 = vcombine.high %v508, %v512
        %v1314 = vunpack.c.l.s4 1983009808
        %v1315 = vunpack.c.0.s8 %v1314
        %v1316 = vlaneseq
        %v1317 = vshrl.u32 %v1316, 7
        %v1318 = vsub.s32 %v1315, %v1317
        %v1319 = vrot.slane %v1311, %v1318
        %v1321 = vunpack.c.l.s4 1983009808
        %v1322 = vunpack.c.0.s8 %v1321
        %v1323 = vlaneseq
        %v1324 = vshrl.u32 %v1323, 7
        %v1325 = vsub.s32 %v1322, %v1324
        %v1326 = vrot.slane %v1312, %v1325
        %v1327 = vcombine.low %v510, %v514
        %v1328 = vcombine.high %v510, %v514
        %v1330 = vunpack.c.l.s4 1983009808
        %v1331 = vunpack.c.0.s8 %v1330
        %v1332 = vlaneseq
        %v1333 = vshrl.u32 %v1332, 7
        %v1334 = vsub.s32 %v1331, %v1333
        %v1335 = vrot.slane %v1327, %v1334
        %v1337 = vunpack.c.l.s4 1983009808
        %v1338 = vunpack.c.0.s8 %v1337
        %v1339 = vlaneseq
        %v1340 = vshrl.u32 %v1339, 7
        %v1341 = vsub.s32 %v1338, %v1340
        %v1342 = vrot.slane %v1328, %v1341
        %v1343 = vcombine.low %v542, %v550
        %v1344 = vcombine.high %v542, %v550
        %v1346 = vunpack.c.l.s4 1983009808
        %v1347 = vunpack.c.0.s8 %v1346
        %v1348 = vlaneseq
        %v1349 = vshrl.u32 %v1348, 7
        %v1350 = vsub.s32 %v1347, %v1349
        %v1351 = vrot.slane %v1343, %v1350
        %v1353 = vunpack.c.l.s4 1983009808
        %v1354 = vunpack.c.0.s8 %v1353
        %v1355 = vlaneseq
        %v1356 = vshrl.u32 %v1355, 7
        %v1357 = vsub.s32 %v1354, %v1356
        %v1358 = vrot.slane %v1344, %v1357
        %v1359 = vcombine.low %v546, %v554
        %v1360 = vcombine.high %v546, %v554
        %v1362 = vunpack.c.l.s4 1983009808
        %v1363 = vunpack.c.0.s8 %v1362
        %v1364 = vlaneseq
        %v1365 = vshrl.u32 %v1364, 7
        %v1366 = vsub.s32 %v1363, %v1365
        %v1367 = vrot.slane %v1359, %v1366
        %v1369 = vunpack.c.l.s4 1983009808
        %v1370 = vunpack.c.0.s8 %v1369
        %v1371 = vlaneseq
        %v1372 = vshrl.u32 %v1371, 7
        %v1373 = vsub.s32 %v1370, %v1372
        %v1374 = vrot.slane %v1360, %v1373
        %v1375 = vcombine.low %v1319, %v1335
        %v1376 = vcombine.high %v1319, %v1335
        %v1378 = vunpack.c.l.s4 1934713408
        %v1379 = vunpack.c.0.s8 %v1378
        %v1380 = vlaneseq
        %v1381 = vshrl.u32 %v1380, 7
        %v1382 = vsub.s32 %v1379, %v1381
        %v1383 = vrot.slane %v1375, %v1382
        %v1385 = vunpack.c.l.s4 1934713408
        %v1386 = vunpack.c.0.s8 %v1385
        %v1387 = vlaneseq
        %v1388 = vshrl.u32 %v1387, 7
        %v1389 = vsub.s32 %v1386, %v1388
        %v1390 = vrot.slane %v1376, %v1389
        %v1391 = vcombine.low %v1326, %v1342
        %v1392 = vcombine.high %v1326, %v1342
        %v1394 = vunpack.c.l.s4 1934713408
        %v1395 = vunpack.c.0.s8 %v1394
        %v1396 = vlaneseq
        %v1397 = vshrl.u32 %v1396, 7
        %v1398 = vsub.s32 %v1395, %v1397
        %v1399 = vrot.slane %v1391, %v1398
        %v1401 = vunpack.c.l.s4 1934713408
        %v1402 = vunpack.c.0.s8 %v1401
        %v1403 = vlaneseq
        %v1404 = vshrl.u32 %v1403, 7
        %v1405 = vsub.s32 %v1402, %v1404
        %v1406 = vrot.slane %v1392, %v1405
        %v1407 = vcombine.low %v1351, %v1367
        %v1408 = vcombine.high %v1351, %v1367
        %v1410 = vunpack.c.l.s4 1934713408
        %v1411 = vunpack.c.0.s8 %v1410
        %v1412 = vlaneseq
        %v1413 = vshrl.u32 %v1412, 7
        %v1414 = vsub.s32 %v1411, %v1413
        %v1415 = vrot.slane %v1407, %v1414
        %v1417 = vunpack.c.l.s4 1934713408
        %v1418 = vunpack.c.0.s8 %v1417
        %v1419 = vlaneseq
        %v1420 = vshrl.u32 %v1419, 7
        %v1421 = vsub.s32 %v1418, %v1420
        %v1422 = vrot.slane %v1408, %v1421
        %v1423 = vcombine.low %v1358, %v1374
        %v1424 = vcombine.high %v1358, %v1374
        %v1426 = vunpack.c.l.s4 1934713408
        %v1427 = vunpack.c.0.s8 %v1426
        %v1428 = vlaneseq
        %v1429 = vshrl.u32 %v1428, 7
        %v1430 = vsub.s32 %v1427, %v1429
        %v1431 = vrot.slane %v1423, %v1430
        %v1433 = vunpack.c.l.s4 1934713408
        %v1434 = vunpack.c.0.s8 %v1433
        %v1435 = vlaneseq
        %v1436 = vshrl.u32 %v1435, 7
        %v1437 = vsub.s32 %v1434, %v1436
        %v1438 = vrot.slane %v1424, %v1437
        %v1439 = vcombine.low %v1383, %v1415
        %v1440 = vcombine.high %v1383, %v1415
        %v1441 = vcombine.low %v1390, %v1422
        %v1442 = vcombine.high %v1390, %v1422
        %v1443 = vcombine.low %v1399, %v1431
        %v1444 = vcombine.high %v1399, %v1431
        %v1445 = vcombine.low %v1406, %v1438
        %v1446 = vcombine.high %v1406, %v1438
        %v1447 = vcombine.low %v566, %v574
        %v1448 = vcombine.high %v566, %v574
        %v1450 = vunpack.c.l.s4 1983009808
        %v1451 = vunpack.c.0.s8 %v1450
        %v1452 = vlaneseq
        %v1453 = vshrl.u32 %v1452, 7
        %v1454 = vsub.s32 %v1451, %v1453
        %v1455 = vrot.slane %v1447, %v1454
        %v1457 = vunpack.c.l.s4 1983009808
        %v1458 = vunpack.c.0.s8 %v1457
        %v1459 = vlaneseq
        %v1460 = vshrl.u32 %v1459, 7
        %v1461 = vsub.s32 %v1458, %v1460
        %v1462 = vrot.slane %v1448, %v1461
        %v1463 = vcombine.low %v570, %v578
        %v1464 = vcombine.high %v570, %v578
        %v1466 = vunpack.c.l.s4 1983009808
        %v1467 = vunpack.c.0.s8 %v1466
        %v1468 = vlaneseq
        %v1469 = vshrl.u32 %v1468, 7
        %v1470 = vsub.s32 %v1467, %v1469
        %v1471 = vrot.slane %v1463, %v1470
        %v1473 = vunpack.c.l.s4 1983009808
        %v1474 = vunpack.c.0.s8 %v1473
        %v1475 = vlaneseq
        %v1476 = vshrl.u32 %v1475, 7
        %v1477 = vsub.s32 %v1474, %v1476
        %v1478 = vrot.slane %v1464, %v1477
        %v1479 = vcombine.low %v516, %v520
        %v1480 = vcombine.high %v516, %v520
        %v1482 = vunpack.c.l.s4 1983009808
        %v1483 = vunpack.c.0.s8 %v1482
        %v1484 = vlaneseq
        %v1485 = vshrl.u32 %v1484, 7
        %v1486 = vsub.s32 %v1483, %v1485
        %v1487 = vrot.slane %v1479, %v1486
        %v1489 = vunpack.c.l.s4 1983009808
        %v1490 = vunpack.c.0.s8 %v1489
        %v1491 = vlaneseq
        %v1492 = vshrl.u32 %v1491, 7
        %v1493 = vsub.s32 %v1490, %v1492
        %v1494 = vrot.slane %v1480, %v1493
        %v1495 = vcombine.low %v518, %v522
        %v1496 = vcombine.high %v518, %v522
        %v1498 = vunpack.c.l.s4 1983009808
        %v1499 = vunpack.c.0.s8 %v1498
        %v1500 = vlaneseq
        %v1501 = vshrl.u32 %v1500, 7
        %v1502 = vsub.s32 %v1499, %v1501
        %v1503 = vrot.slane %v1495, %v1502
        %v1505 = vunpack.c.l.s4 1983009808
        %v1506 = vunpack.c.0.s8 %v1505
        %v1507 = vlaneseq
        %v1508 = vshrl.u32 %v1507, 7
        %v1509 = vsub.s32 %v1506, %v1508
        %v1510 = vrot.slane %v1496, %v1509
        %v1511 = vcombine.low %v1455, %v1471
        %v1512 = vcombine.high %v1455, %v1471
        %v1514 = vunpack.c.l.s4 1934713408
        %v1515 = vunpack.c.0.s8 %v1514
        %v1516 = vlaneseq
        %v1517 = vshrl.u32 %v1516, 7
        %v1518 = vsub.s32 %v1515, %v1517
        %v1519 = vrot.slane %v1511, %v1518
        %v1521 = vunpack.c.l.s4 1934713408
        %v1522 = vunpack.c.0.s8 %v1521
        %v1523 = vlaneseq
        %v1524 = vshrl.u32 %v1523, 7
        %v1525 = vsub.s32 %v1522, %v1524
        %v1526 = vrot.slane %v1512, %v1525
        %v1527 = vcombine.low %v1462, %v1478
        %v1528 = vcombine.high %v1462, %v1478
        %v1530 = vunpack.c.l.s4 1934713408
        %v1531 = vunpack.c.0.s8 %v1530
        %v1532 = vlaneseq
        %v1533 = vshrl.u32 %v1532, 7
        %v1534 = vsub.s32 %v1531, %v1533
        %v1535 = vrot.slane %v1527, %v1534
        %v1537 = vunpack.c.l.s4 1934713408
        %v1538 = vunpack.c.0.s8 %v1537
        %v1539 = vlaneseq
        %v1540 = vshrl.u32 %v1539, 7
        %v1541 = vsub.s32 %v1538, %v1540
        %v1542 = vrot.slane %v1528, %v1541
        %v1543 = vcombine.low %v1487, %v1503
        %v1544 = vcombine.high %v1487, %v1503
        %v1546 = vunpack.c.l.s4 1934713408
        %v1547 = vunpack.c.0.s8 %v1546
        %v1548 = vlaneseq
        %v1549 = vshrl.u32 %v1548, 7
        %v1550 = vsub.s32 %v1547, %v1549
        %v1551 = vrot.slane %v1543, %v1550
        %v1553 = vunpack.c.l.s4 1934713408
        %v1554 = vunpack.c.0.s8 %v1553
        %v1555 = vlaneseq
        %v1556 = vshrl.u32 %v1555, 7
        %v1557 = vsub.s32 %v1554, %v1556
        %v1558 = vrot.slane %v1544, %v1557
        %v1559 = vcombine.low %v1494, %v1510
        %v1560 = vcombine.high %v1494, %v1510
        %v1562 = vunpack.c.l.s4 1934713408
        %v1563 = vunpack.c.0.s8 %v1562
        %v1564 = vlaneseq
        %v1565 = vshrl.u32 %v1564, 7
        %v1566 = vsub.s32 %v1563, %v1565
        %v1567 = vrot.slane %v1559, %v1566
        %v1569 = vunpack.c.l.s4 1934713408
        %v1570 = vunpack.c.0.s8 %v1569
        %v1571 = vlaneseq
        %v1572 = vshrl.u32 %v1571, 7
        %v1573 = vsub.s32 %v1570, %v1572
        %v1574 = vrot.slane %v1560, %v1573
        %v1575 = vcombine.low %v1519, %v1551
        %v1576 = vcombine.high %v1519, %v1551
        %v1577 = vcombine.low %v1526, %v1558
        %v1578 = vcombine.high %v1526, %v1558
        %v1579 = vcombine.low %v1535, %v1567
        %v1580 = vcombine.high %v1535, %v1567
        %v1581 = vcombine.low %v1542, %v1574
        %v1582 = vcombine.high %v1542, %v1574
        %v1583 = vcombine.low %v598, %v606
        %v1584 = vcombine.high %v598, %v606
        %v1586 = vunpack.c.l.s4 1983009808
        %v1587 = vunpack.c.0.s8 %v1586
        %v1588 = vlaneseq
        %v1589 = vshrl.u32 %v1588, 7
        %v1590 = vsub.s32 %v1587, %v1589
        %v1591 = vrot.slane %v1583, %v1590
        %v1593 = vunpack.c.l.s4 1983009808
        %v1594 = vunpack.c.0.s8 %v1593
        %v1595 = vlaneseq
        %v1596 = vshrl.u32 %v1595, 7
        %v1597 = vsub.s32 %v1594, %v1596
        %v1598 = vrot.slane %v1584, %v1597
        %v1599 = vcombine.low %v602, %v610
        %v1600 = vcombine.high %v602, %v610
        %v1602 = vunpack.c.l.s4 1983009808
        %v1603 = vunpack.c.0.s8 %v1602
        %v1604 = vlaneseq
        %v1605 = vshrl.u32 %v1604, 7
        %v1606 = vsub.s32 %v1603, %v1605
        %v1607 = vrot.slane %v1599, %v1606
        %v1609 = vunpack.c.l.s4 1983009808
        %v1610 = vunpack.c.0.s8 %v1609
        %v1611 = vlaneseq
        %v1612 = vshrl.u32 %v1611, 7
        %v1613 = vsub.s32 %v1610, %v1612
        %v1614 = vrot.slane %v1600, %v1613
        %v1615 = vcombine.low %v622, %v630
        %v1616 = vcombine.high %v622, %v630
        %v1618 = vunpack.c.l.s4 1983009808
        %v1619 = vunpack.c.0.s8 %v1618
        %v1620 = vlaneseq
        %v1621 = vshrl.u32 %v1620, 7
        %v1622 = vsub.s32 %v1619, %v1621
        %v1623 = vrot.slane %v1615, %v1622
        %v1625 = vunpack.c.l.s4 1983009808
        %v1626 = vunpack.c.0.s8 %v1625
        %v1627 = vlaneseq
        %v1628 = vshrl.u32 %v1627, 7
        %v1629 = vsub.s32 %v1626, %v1628
        %v1630 = vrot.slane %v1616, %v1629
        %v1631 = vcombine.low %v626, %v634
        %v1632 = vcombine.high %v626, %v634
        %v1634 = vunpack.c.l.s4 1983009808
        %v1635 = vunpack.c.0.s8 %v1634
        %v1636 = vlaneseq
        %v1637 = vshrl.u32 %v1636, 7
        %v1638 = vsub.s32 %v1635, %v1637
        %v1639 = vrot.slane %v1631, %v1638
        %v1641 = vunpack.c.l.s4 1983009808
        %v1642 = vunpack.c.0.s8 %v1641
        %v1643 = vlaneseq
        %v1644 = vshrl.u32 %v1643, 7
        %v1645 = vsub.s32 %v1642, %v1644
        %v1646 = vrot.slane %v1632, %v1645
        %v1647 = vcombine.low %v1591, %v1607
        %v1648 = vcombine.high %v1591, %v1607
        %v1650 = vunpack.c.l.s4 1934713408
        %v1651 = vunpack.c.0.s8 %v1650
        %v1652 = vlaneseq
        %v1653 = vshrl.u32 %v1652, 7
        %v1654 = vsub.s32 %v1651, %v1653
        %v1655 = vrot.slane %v1647, %v1654
        %v1657 = vunpack.c.l.s4 1934713408
        %v1658 = vunpack.c.0.s8 %v1657
        %v1659 = vlaneseq
        %v1660 = vshrl.u32 %v1659, 7
        %v1661 = vsub.s32 %v1658, %v1660
        %v1662 = vrot.slane %v1648, %v1661
        %v1663 = vcombine.low %v1598, %v1614
        %v1664 = vcombine.high %v1598, %v1614
        %v1666 = vunpack.c.l.s4 1934713408
        %v1667 = vunpack.c.0.s8 %v1666
        %v1668 = vlaneseq
        %v1669 = vshrl.u32 %v1668, 7
        %v1670 = vsub.s32 %v1667, %v1669
        %v1671 = vrot.slane %v1663, %v1670
        %v1673 = vunpack.c.l.s4 1934713408
        %v1674 = vunpack.c.0.s8 %v1673
        %v1675 = vlaneseq
        %v1676 = vshrl.u32 %v1675, 7
        %v1677 = vsub.s32 %v1674, %v1676
        %v1678 = vrot.slane %v1664, %v1677
        %v1679 = vcombine.low %v1623, %v1639
        %v1680 = vcombine.high %v1623, %v1639
        %v1682 = vunpack.c.l.s4 1934713408
        %v1683 = vunpack.c.0.s8 %v1682
        %v1684 = vlaneseq
        %v1685 = vshrl.u32 %v1684, 7
        %v1686 = vsub.s32 %v1683, %v1685
        %v1687 = vrot.slane %v1679, %v1686
        %v1689 = vunpack.c.l.s4 1934713408
        %v1690 = vunpack.c.0.s8 %v1689
        %v1691 = vlaneseq
        %v1692 = vshrl.u32 %v1691, 7
        %v1693 = vsub.s32 %v1690, %v1692
        %v1694 = vrot.slane %v1680, %v1693
        %v1695 = vcombine.low %v1630, %v1646
        %v1696 = vcombine.high %v1630, %v1646
        %v1698 = vunpack.c.l.s4 1934713408
        %v1699 = vunpack.c.0.s8 %v1698
        %v1700 = vlaneseq
        %v1701 = vshrl.u32 %v1700, 7
        %v1702 = vsub.s32 %v1699, %v1701
        %v1703 = vrot.slane %v1695, %v1702
        %v1705 = vunpack.c.l.s4 1934713408
        %v1706 = vunpack.c.0.s8 %v1705
        %v1707 = vlaneseq
        %v1708 = vshrl.u32 %v1707, 7
        %v1709 = vsub.s32 %v1706, %v1708
        %v1710 = vrot.slane %v1696, %v1709
        %v1711 = vcombine.low %v1655, %v1687
        %v1712 = vcombine.high %v1655, %v1687
        %v1713 = vcombine.low %v1662, %v1694
        %v1714 = vcombine.high %v1662, %v1694
        %v1715 = vcombine.low %v1671, %v1703
        %v1716 = vcombine.high %v1671, %v1703
        %v1717 = vcombine.low %v1678, %v1710
        %v1718 = vcombine.high %v1678, %v1710
        %v1719 = vcombine.low %v524, %v528
        %v1720 = vcombine.high %v524, %v528
        %v1722 = vunpack.c.l.s4 1983009808
        %v1723 = vunpack.c.0.s8 %v1722
        %v1724 = vlaneseq
        %v1725 = vshrl.u32 %v1724, 7
        %v1726 = vsub.s32 %v1723, %v1725
        %v1727 = vrot.slane %v1719, %v1726
        %v1729 = vunpack.c.l.s4 1983009808
        %v1730 = vunpack.c.0.s8 %v1729
        %v1731 = vlaneseq
        %v1732 = vshrl.u32 %v1731, 7
        %v1733 = vsub.s32 %v1730, %v1732
        %v1734 = vrot.slane %v1720, %v1733
        %v1735 = vcombine.low %v526, %v530
        %v1736 = vcombine.high %v526, %v530
        %v1738 = vunpack.c.l.s4 1983009808
        %v1739 = vunpack.c.0.s8 %v1738
        %v1740 = vlaneseq
        %v1741 = vshrl.u32 %v1740, 7
        %v1742 = vsub.s32 %v1739, %v1741
        %v1743 = vrot.slane %v1735, %v1742
        %v1745 = vunpack.c.l.s4 1983009808
        %v1746 = vunpack.c.0.s8 %v1745
        %v1747 = vlaneseq
        %v1748 = vshrl.u32 %v1747, 7
        %v1749 = vsub.s32 %v1746, %v1748
        %v1750 = vrot.slane %v1736, %v1749
        %v1751 = vcombine.low %v654, %v662
        %v1752 = vcombine.high %v654, %v662
        %v1754 = vunpack.c.l.s4 1983009808
        %v1755 = vunpack.c.0.s8 %v1754
        %v1756 = vlaneseq
        %v1757 = vshrl.u32 %v1756, 7
        %v1758 = vsub.s32 %v1755, %v1757
        %v1759 = vrot.slane %v1751, %v1758
        %v1761 = vunpack.c.l.s4 1983009808
        %v1762 = vunpack.c.0.s8 %v1761
        %v1763 = vlaneseq
        %v1764 = vshrl.u32 %v1763, 7
        %v1765 = vsub.s32 %v1762, %v1764
        %v1766 = vrot.slane %v1752, %v1765
        %v1767 = vcombine.low %v658, %v666
        %v1768 = vcombine.high %v658, %v666
        %v1770 = vunpack.c.l.s4 1983009808
        %v1771 = vunpack.c.0.s8 %v1770
        %v1772 = vlaneseq
        %v1773 = vshrl.u32 %v1772, 7
        %v1774 = vsub.s32 %v1771, %v1773
        %v1775 = vrot.slane %v1767, %v1774
        %v1777 = vunpack.c.l.s4 1983009808
        %v1778 = vunpack.c.0.s8 %v1777
        %v1779 = vlaneseq
        %v1780 = vshrl.u32 %v1779, 7
        %v1781 = vsub.s32 %v1778, %v1780
        %v1782 = vrot.slane %v1768, %v1781
        %v1783 = vcombine.low %v1727, %v1743
        %v1784 = vcombine.high %v1727, %v1743
        %v1786 = vunpack.c.l.s4 1934713408
        %v1787 = vunpack.c.0.s8 %v1786
        %v1788 = vlaneseq
        %v1789 = vshrl.u32 %v1788, 7
        %v1790 = vsub.s32 %v1787, %v1789
        %v1791 = vrot.slane %v1783, %v1790
        %v1793 = vunpack.c.l.s4 1934713408
        %v1794 = vunpack.c.0.s8 %v1793
        %v1795 = vlaneseq
        %v1796 = vshrl.u32 %v1795, 7
        %v1797 = vsub.s32 %v1794, %v1796
        %v1798 = vrot.slane %v1784, %v1797
        %v1799 = vcombine.low %v1734, %v1750
        %v1800 = vcombine.high %v1734, %v1750
        %v1802 = vunpack.c.l.s4 1934713408
        %v1803 = vunpack.c.0.s8 %v1802
        %v1804 = vlaneseq
        %v1805 = vshrl.u32 %v1804, 7
        %v1806 = vsub.s32 %v1803, %v1805
        %v1807 = vrot.slane %v1799, %v1806
        %v1809 = vunpack.c.l.s4 1934713408
        %v1810 = vunpack.c.0.s8 %v1809
        %v1811 = vlaneseq
        %v1812 = vshrl.u32 %v1811, 7
        %v1813 = vsub.s32 %v1810, %v1812
        %v1814 = vrot.slane %v1800, %v1813
        %v1815 = vcombine.low %v1759, %v1775
        %v1816 = vcombine.high %v1759, %v1775
        %v1818 = vunpack.c.l.s4 1934713408
        %v1819 = vunpack.c.0.s8 %v1818
        %v1820 = vlaneseq
        %v1821 = vshrl.u32 %v1820, 7
        %v1822 = vsub.s32 %v1819, %v1821
        %v1823 = vrot.slane %v1815, %v1822
        %v1825 = vunpack.c.l.s4 1934713408
        %v1826 = vunpack.c.0.s8 %v1825
        %v1827 = vlaneseq
        %v1828 = vshrl.u32 %v1827, 7
        %v1829 = vsub.s32 %v1826, %v1828
        %v1830 = vrot.slane %v1816, %v1829
        %v1831 = vcombine.low %v1766, %v1782
        %v1832 = vcombine.high %v1766, %v1782
        %v1834 = vunpack.c.l.s4 1934713408
        %v1835 = vunpack.c.0.s8 %v1834
        %v1836 = vlaneseq
        %v1837 = vshrl.u32 %v1836, 7
        %v1838 = vsub.s32 %v1835, %v1837
        %v1839 = vrot.slane %v1831, %v1838
        %v1841 = vunpack.c.l.s4 1934713408
        %v1842 = vunpack.c.0.s8 %v1841
        %v1843 = vlaneseq
        %v1844 = vshrl.u32 %v1843, 7
        %v1845 = vsub.s32 %v1842, %v1844
        %v1846 = vrot.slane %v1832, %v1845
        %v1847 = vcombine.low %v1791, %v1823
        %v1848 = vcombine.high %v1791, %v1823
        %v1849 = vcombine.low %v1798, %v1830
        %v1850 = vcombine.high %v1798, %v1830
        %v1851 = vcombine.low %v1807, %v1839
        %v1852 = vcombine.high %v1807, %v1839
        %v1853 = vcombine.low %v1814, %v1846
        %v1854 = vcombine.high %v1814, %v1846
        %v1855 = vcombine.low %v678, %v686
        %v1856 = vcombine.high %v678, %v686
        %v1858 = vunpack.c.l.s4 1983009808
        %v1859 = vunpack.c.0.s8 %v1858
        %v1860 = vlaneseq
        %v1861 = vshrl.u32 %v1860, 7
        %v1862 = vsub.s32 %v1859, %v1861
        %v1863 = vrot.slane %v1855, %v1862
        %v1865 = vunpack.c.l.s4 1983009808
        %v1866 = vunpack.c.0.s8 %v1865
        %v1867 = vlaneseq
        %v1868 = vshrl.u32 %v1867, 7
        %v1869 = vsub.s32 %v1866, %v1868
        %v1870 = vrot.slane %v1856, %v1869
        %v1871 = vcombine.low %v682, %v690
        %v1872 = vcombine.high %v682, %v690
        %v1874 = vunpack.c.l.s4 1983009808
        %v1875 = vunpack.c.0.s8 %v1874
        %v1876 = vlaneseq
        %v1877 = vshrl.u32 %v1876, 7
        %v1878 = vsub.s32 %v1875, %v1877
        %v1879 = vrot.slane %v1871, %v1878
        %v1881 = vunpack.c.l.s4 1983009808
        %v1882 = vunpack.c.0.s8 %v1881
        %v1883 = vlaneseq
        %v1884 = vshrl.u32 %v1883, 7
        %v1885 = vsub.s32 %v1882, %v1884
        %v1886 = vrot.slane %v1872, %v1885
        %v1887 = vcombine.low %v1863, %v1879
        %v1888 = vcombine.high %v1863, %v1879
        %v1890 = vunpack.c.l.s4 1934713408
        %v1891 = vunpack.c.0.s8 %v1890
        %v1892 = vlaneseq
        %v1893 = vshrl.u32 %v1892, 7
        %v1894 = vsub.s32 %v1891, %v1893
        %v1895 = vrot.slane %v1887, %v1894
        %v1897 = vunpack.c.l.s4 1934713408
        %v1898 = vunpack.c.0.s8 %v1897
        %v1899 = vlaneseq
        %v1900 = vshrl.u32 %v1899, 7
        %v1901 = vsub.s32 %v1898, %v1900
        %v1902 = vrot.slane %v1888, %v1901
        %v1903 = vcombine.low %v1870, %v1886
        %v1904 = vcombine.high %v1870, %v1886
        %v1906 = vunpack.c.l.s4 1934713408
        %v1907 = vunpack.c.0.s8 %v1906
        %v1908 = vlaneseq
        %v1909 = vshrl.u32 %v1908, 7
        %v1910 = vsub.s32 %v1907, %v1909
        %v1911 = vrot.slane %v1903, %v1910
        %v1913 = vunpack.c.l.s4 1934713408
        %v1914 = vunpack.c.0.s8 %v1913
        %v1915 = vlaneseq
        %v1916 = vshrl.u32 %v1915, 7
        %v1917 = vsub.s32 %v1914, %v1916
        %v1918 = vrot.slane %v1904, %v1917
        %v1919 = vcombine.high %v1895, 0.0
        %v1920 = vcombine.high %v1902, 0.0
        %v1921 = vcombine.high %v1911, 0.0
        %v1922 = vcombine.high %v1918, 0.0
        %1928 = vrot.lane.b32.xlu0 %v828, 32
        %v1929 = vpop.permute.xlu0 %1928
        %1930 = vrot.lane.b32.xlu0 %v964, 32
        %v1931 = vpop.permute.xlu0 %1930
        %1932 = vrot.lane.b32.xlu0 %v1100, 32
        %v1933 = vpop.permute.xlu0 %1932
        %1934 = vrot.lane.b32.xlu0 %v1236, 32
        %v1935 = vpop.permute.xlu0 %1934
        %1936 = vrot.lane.b32.xlu0 %v1307, 32
        %v1937 = vpop.permute.xlu0 %1936
        %1948 = vrot.lane.b32.xlu0 %v829, 64
        %v1949 = vpop.permute.xlu0 %1948
        %1950 = vrot.lane.b32.xlu0 %v965, 64
        %v1951 = vpop.permute.xlu0 %1950
        %1952 = vrot.lane.b32.xlu0 %v1101, 64
        %v1953 = vpop.permute.xlu0 %1952
        %1954 = vrot.lane.b32.xlu0 %v1237, 64
        %v1955 = vpop.permute.xlu0 %1954
        %1956 = vrot.lane.b32.xlu0 %v1290, 64
        %v1957 = vpop.permute.xlu0 %1956
        %1968 = vrot.lane.b32.xlu0 %v830, 96
        %v1969 = vpop.permute.xlu0 %1968
        %1970 = vrot.lane.b32.xlu0 %v966, 96
        %v1971 = vpop.permute.xlu0 %1970
        %1972 = vrot.lane.b32.xlu0 %v1102, 96
        %v1973 = vpop.permute.xlu0 %1972
        %1974 = vrot.lane.b32.xlu0 %v1238, 96
        %v1975 = vpop.permute.xlu0 %1974
        %1976 = vrot.lane.b32.xlu0 %v1308, 96
        %v1977 = vpop.permute.xlu0 %1976
        %1988 = vrot.lane.b32.xlu0 %v832, 32
        %v1989 = vpop.permute.xlu0 %1988
        %1990 = vrot.lane.b32.xlu0 %v968, 32
        %v1991 = vpop.permute.xlu0 %1990
        %1992 = vrot.lane.b32.xlu0 %v1104, 32
        %v1993 = vpop.permute.xlu0 %1992
        %1994 = vrot.lane.b32.xlu0 %v1240, 32
        %v1995 = vpop.permute.xlu0 %1994
        %1996 = vrot.lane.b32.xlu0 %v1309, 32
        %v1997 = vpop.permute.xlu0 %1996
        %2008 = vrot.lane.b32.xlu0 %v833, 64
        %v2009 = vpop.permute.xlu0 %2008
        %2010 = vrot.lane.b32.xlu0 %v969, 64
        %v2011 = vpop.permute.xlu0 %2010
        %2012 = vrot.lane.b32.xlu0 %v1105, 64
        %v2013 = vpop.permute.xlu0 %2012
        %2014 = vrot.lane.b32.xlu0 %v1241, 64
        %v2015 = vpop.permute.xlu0 %2014
        %2016 = vrot.lane.b32.xlu0 %v1306, 64
        %v2017 = vpop.permute.xlu0 %2016
        %2028 = vrot.lane.b32.xlu0 %v834, 96
        %v2029 = vpop.permute.xlu0 %2028
        %2030 = vrot.lane.b32.xlu0 %v970, 96
        %v2031 = vpop.permute.xlu0 %2030
        %2032 = vrot.lane.b32.xlu0 %v1106, 96
        %v2033 = vpop.permute.xlu0 %2032
        %2034 = vrot.lane.b32.xlu0 %v1242, 96
        %v2035 = vpop.permute.xlu0 %2034
        %2036 = vrot.lane.b32.xlu0 %v1310, 96
        %v2037 = vpop.permute.xlu0 %2036
        %2048 = vrot.lane.b32.xlu0 %v1440, 32
        %v2049 = vpop.permute.xlu0 %2048
        %2050 = vrot.lane.b32.xlu0 %v1576, 32
        %v2051 = vpop.permute.xlu0 %2050
        %2052 = vrot.lane.b32.xlu0 %v1712, 32
        %v2053 = vpop.permute.xlu0 %2052
        %2054 = vrot.lane.b32.xlu0 %v1848, 32
        %v2055 = vpop.permute.xlu0 %2054
        %2056 = vrot.lane.b32.xlu0 %v1919, 32
        %v2057 = vpop.permute.xlu0 %2056
        %2068 = vrot.lane.b32.xlu0 %v1441, 64
        %v2069 = vpop.permute.xlu0 %2068
        %2070 = vrot.lane.b32.xlu0 %v1577, 64
        %v2071 = vpop.permute.xlu0 %2070
        %2072 = vrot.lane.b32.xlu0 %v1713, 64
        %v2073 = vpop.permute.xlu0 %2072
        %2074 = vrot.lane.b32.xlu0 %v1849, 64
        %v2075 = vpop.permute.xlu0 %2074
        %2076 = vrot.lane.b32.xlu0 %v1902, 64
        %v2077 = vpop.permute.xlu0 %2076
        %2088 = vrot.lane.b32.xlu0 %v1442, 96
        %v2089 = vpop.permute.xlu0 %2088
        %2090 = vrot.lane.b32.xlu0 %v1578, 96
        %v2091 = vpop.permute.xlu0 %2090
        %2092 = vrot.lane.b32.xlu0 %v1714, 96
        %v2093 = vpop.permute.xlu0 %2092
        %2094 = vrot.lane.b32.xlu0 %v1850, 96
        %v2095 = vpop.permute.xlu0 %2094
        %2096 = vrot.lane.b32.xlu0 %v1920, 96
        %v2097 = vpop.permute.xlu0 %2096
        %2108 = vrot.lane.b32.xlu0 %v1444, 32
        %v2109 = vpop.permute.xlu0 %2108
        %2110 = vrot.lane.b32.xlu0 %v1580, 32
        %v2111 = vpop.permute.xlu0 %2110
        %2112 = vrot.lane.b32.xlu0 %v1716, 32
        %v2113 = vpop.permute.xlu0 %2112
        %2114 = vrot.lane.b32.xlu0 %v1852, 32
        %v2115 = vpop.permute.xlu0 %2114
        %2116 = vrot.lane.b32.xlu0 %v1921, 32
        %v2117 = vpop.permute.xlu0 %2116
        %2128 = vrot.lane.b32.xlu0 %v1445, 64
        %v2129 = vpop.permute.xlu0 %2128
        %2130 = vrot.lane.b32.xlu0 %v1581, 64
        %v2131 = vpop.permute.xlu0 %2130
        %2132 = vrot.lane.b32.xlu0 %v1717, 64
        %v2133 = vpop.permute.xlu0 %2132
        %2134 = vrot.lane.b32.xlu0 %v1853, 64
        %v2135 = vpop.permute.xlu0 %2134
        %2136 = vrot.lane.b32.xlu0 %v1918, 64
        %v2137 = vpop.permute.xlu0 %2136
        %2148 = vrot.lane.b32.xlu0 %v1446, 96
        %v2149 = vpop.permute.xlu0 %2148
        %2150 = vrot.lane.b32.xlu0 %v1582, 96
        %v2151 = vpop.permute.xlu0 %2150
        %2152 = vrot.lane.b32.xlu0 %v1718, 96
        %v2153 = vpop.permute.xlu0 %2152
        %2154 = vrot.lane.b32.xlu0 %v1854, 96
        %v2155 = vpop.permute.xlu0 %2154
        %2156 = vrot.lane.b32.xlu0 %v1922, 96
        %v2157 = vpop.permute.xlu0 %2156
        %vm2163 = vcmask 261120
        %v2164 = vsel %vm2163, %v827, %v1929
        %v2165 = vsel %vm2163, %v963, %v1931
        %v2166 = vsel %vm2163, %v1099, %v1933
        %v2167 = vsel %vm2163, %v1235, %v1935
        %v2168 = vsel %vm2163, %v1283, %v1937
        %vm2169 = vcmask 523264
        %v2170 = vsel %vm2169, %v2164, %v1949
        %v2171 = vsel %vm2169, %v2165, %v1951
        %v2172 = vsel %vm2169, %v2166, %v1953
        %v2173 = vsel %vm2169, %v2167, %v1955
        %v2174 = vsel %vm2169, %v2168, %v1957
        %vm2175 = vcmask 785408
        %v2176 = vsel %vm2175, %v2170, %v1969
        %v2177 = vsel %vm2175, %v2171, %v1971
        %v2178 = vsel %vm2175, %v2172, %v1973
        %v2179 = vsel %vm2175, %v2173, %v1975
        %v2180 = vsel %vm2175, %v2174, %v1977
        %v2181 = vsel %vm2163, %v831, %v1989
        %v2182 = vsel %vm2163, %v967, %v1991
        %v2183 = vsel %vm2163, %v1103, %v1993
        %v2184 = vsel %vm2163, %v1239, %v1995
        %v2185 = vsel %vm2163, %v1299, %v1997
        %v2186 = vsel %vm2169, %v2181, %v2009
        %v2187 = vsel %vm2169, %v2182, %v2011
        %v2188 = vsel %vm2169, %v2183, %v2013
        %v2189 = vsel %vm2169, %v2184, %v2015
        %v2190 = vsel %vm2169, %v2185, %v2017
        %v2191 = vsel %vm2175, %v2186, %v2029
        %v2192 = vsel %vm2175, %v2187, %v2031
        %v2193 = vsel %vm2175, %v2188, %v2033
        %v2194 = vsel %vm2175, %v2189, %v2035
        %v2195 = vsel %vm2175, %v2190, %v2037
        %v2196 = vsel %vm2163, %v1439, %v2049
        %v2197 = vsel %vm2163, %v1575, %v2051
        %v2198 = vsel %vm2163, %v1711, %v2053
        %v2199 = vsel %vm2163, %v1847, %v2055
        %v2200 = vsel %vm2163, %v1895, %v2057
        %v2201 = vsel %vm2169, %v2196, %v2069
        %v2202 = vsel %vm2169, %v2197, %v2071
        %v2203 = vsel %vm2169, %v2198, %v2073
        %v2204 = vsel %vm2169, %v2199, %v2075
        %v2205 = vsel %vm2169, %v2200, %v2077
        %v2206 = vsel %vm2175, %v2201, %v2089
        %v2207 = vsel %vm2175, %v2202, %v2091
        %v2208 = vsel %vm2175, %v2203, %v2093
        %v2209 = vsel %vm2175, %v2204, %v2095
        %v2210 = vsel %vm2175, %v2205, %v2097
        %v2211 = vsel %vm2163, %v1443, %v2109
        %v2212 = vsel %vm2163, %v1579, %v2111
        %v2213 = vsel %vm2163, %v1715, %v2113
        %v2214 = vsel %vm2163, %v1851, %v2115
        %v2215 = vsel %vm2163, %v1911, %v2117
        %v2216 = vsel %vm2169, %v2211, %v2129
        %v2217 = vsel %vm2169, %v2212, %v2131
        %v2218 = vsel %vm2169, %v2213, %v2133
        %v2219 = vsel %vm2169, %v2214, %v2135
        %v2220 = vsel %vm2169, %v2215, %v2137
        %v2221 = vsel %vm2175, %v2216, %v2149
        %v2222 = vsel %vm2175, %v2217, %v2151
        %v2223 = vsel %vm2175, %v2218, %v2153
        %v2224 = vsel %vm2175, %v2219, %v2155
        %v2225 = vsel %vm2175, %v2220, %v2157
        %v2226 = vld [vmem:[%s3] sm:$0xff]
        %v2227 = vld [vmem:[%s4] sm:$0xff]
        %2229 = vset.pattern.permute.xlu0 0
        %2230 = vperm.xlu0 %2229, %v2227
        %v2231 = vpop.permute.xlu0 %2230
        %vm2233 = vcmask 293888
        %v2235 = vsel %vm2233, %v2226, 0
        %vm2237 = vcmask 1043456
        %v2239 = vsel %vm2237, %v2180, 0
        %v2242 = vsel %vm2237, %v2195, 0
        %v2245 = vsel %vm2237, %v2210, 0
        %v2248 = vsel %vm2237, %v2225, 0
        %2250 = vmatprep.subr.mxu0 %v2191
        %2251 = vmatpush1.msra.mxu0 %v2176
        %2252 = vmatprep.subr.mxu0 %v2192
        %2253 = vmatpush1.msra.mxu0 %v2177
        %2254 = vmatprep.subr.mxu0 %v2193
        %2255 = vmatpush1.msra.mxu0 %v2178
        %2256 = vmatprep.subr.mxu0 %v2194
        %2257 = vmatpush1.msra.mxu0 %v2179
        %2258 = vmatprep.subr.mxu0 %v2242
        %2259 = vmatpush1.msra.mxu0 %v2239
        %2260 = vmatprep.subr.mxu0 0.0
        %2261 = vmatpush1.msra.mxu0 0.0
        %2262 = vmatprep.subr.mxu0 0.0
        %2263 = vmatpush1.msra.mxu0 0.0
        %2264 = vmatprep.subr.mxu0 0.0
        %2265 = vmatpush1.msra.mxu0 0.0
        %2266 = vmatprep.subr.mxu0 0.0
        %2267 = vmatpush1.msra.mxu0 0.0
        %2268 = vmatprep.subr.mxu0 0.0
        %2269 = vmatpush1.msra.mxu0 0.0
        %2270 = vmatprep.subr.mxu0 0.0
        %2271 = vmatpush1.msra.mxu0 0.0
        %2272 = vmatprep.subr.mxu0 0.0
        %2273 = vmatpush1.msra.mxu0 0.0
        %2274 = vmatprep.subr.mxu0 0.0
        %2275 = vmatpush1.msra.mxu0 0.0
        %2276 = vmatprep.subr.mxu0 0.0
        %2277 = vmatpush1.msra.mxu0 0.0
        %2278 = vmatprep.subr.mxu0 0.0
        %2279 = vmatpush1.msra.mxu0 0.0
        %2280 = vmatprep.subr.mxu0 0.0
        %2281 = vmatpush1.msra.mxu0 0.0
        %2282 = vmatprep.subr.mxu0 0.0
        %2283 = vmatpush1.msra.mxu0 0.0
        %2284 = vmatprep.subr.mxu0 0.0
        %2285 = vmatpush1.msra.mxu0 0.0
        %2286 = vmatprep.subr.mxu0 0.0
        %2287 = vmatpush1.msra.mxu0 0.0
        %2288 = vmatprep.subr.mxu0 0.0
        %2289 = vmatpush1.msra.mxu0 0.0
        %2290 = vmatprep.subr.mxu0 0.0
        %2291 = vmatpush1.msra.mxu0 0.0
        %2292 = vmatprep.subr.mxu0 0.0
        %2293 = vmatpush1.msra.mxu0 0.0
        %2294 = vmatprep.subr.mxu0 0.0
        %2295 = vmatpush1.msra.mxu0 0.0
        %2296 = vmatprep.subr.mxu0 0.0
        %2297 = vmatpush1.msra.mxu0 0.0
        %2298 = vmatprep.subr.mxu0 0.0
        %2299 = vmatpush1.msra.mxu0 0.0
        %2300 = vmatprep.subr.mxu0 0.0
        %2301 = vmatpush1.msra.mxu0 0.0
        %2302 = vmatprep.subr.mxu0 0.0
        %2303 = vmatpush1.msra.mxu0 0.0
        %2304 = vmatprep.subr.mxu0 0.0
        %2305 = vmatpush1.msra.mxu0 0.0
        %2306 = vmatprep.subr.mxu0 0.0
        %2307 = vmatpush1.msra.mxu0 0.0
        %2308 = vmatprep.subr.mxu0 0.0
        %2309 = vmatpush1.msra.mxu0 0.0
        %2310 = vmatprep.subr.mxu0 0.0
        %2311 = vmatpush1.msra.mxu0 0.0
        %2312 = vmatprep.subr.mxu0 0.0
        %2313 = vmatpush1.msra.mxu0 0.0
        %2314 = vmatprep.mubr.f32.mxu0 0.0
        %2315 = vmatmul.mubr.f32.gmra.mrb[0].mxu0 %v2235
        %v2316 = vpop.f32.mrb[0].mxu0
        %v2317 = vadd.f32 %v2231, %v2316
        %v2318 = vpop.f32.mrb[0].mxu0
        %v2319 = vadd.f32 %v2231, %v2318
        %2320 = vdwg.mxu0
        %2321 = vmatprep.subr.mxu0 %v2221
        %2322 = vmatpush1.msra.mxu0 %v2206
        %2323 = vmatprep.subr.mxu0 %v2222
        %2324 = vmatpush1.msra.mxu0 %v2207
        %2325 = vmatprep.subr.mxu0 %v2223
        %2326 = vmatpush1.msra.mxu0 %v2208
        %2327 = vmatprep.subr.mxu0 %v2224
        %2328 = vmatpush1.msra.mxu0 %v2209
        %2329 = vmatprep.subr.mxu0 %v2248
        %2330 = vmatpush1.msra.mxu0 %v2245
        %2331 = vmatprep.subr.mxu0 0.0
        %2332 = vmatpush1.msra.mxu0 0.0
        %2333 = vmatprep.subr.mxu0 0.0
        %2334 = vmatpush1.msra.mxu0 0.0
        %2335 = vmatprep.subr.mxu0 0.0
        %2336 = vmatpush1.msra.mxu0 0.0
        %2337 = vmatprep.subr.mxu0 0.0
        %2338 = vmatpush1.msra.mxu0 0.0
        %2339 = vmatprep.subr.mxu0 0.0
        %2340 = vmatpush1.msra.mxu0 0.0
        %2341 = vmatprep.subr.mxu0 0.0
        %2342 = vmatpush1.msra.mxu0 0.0
        %2343 = vmatprep.subr.mxu0 0.0
        %2344 = vmatpush1.msra.mxu0 0.0
        %2345 = vmatprep.subr.mxu0 0.0
        %2346 = vmatpush1.msra.mxu0 0.0
        %2347 = vmatprep.subr.mxu0 0.0
        %2348 = vmatpush1.msra.mxu0 0.0
        %2349 = vmatprep.subr.mxu0 0.0
        %2350 = vmatpush1.msra.mxu0 0.0
        %2351 = vmatprep.subr.mxu0 0.0
        %2352 = vmatpush1.msra.mxu0 0.0
        %2353 = vmatprep.subr.mxu0 0.0
        %2354 = vmatpush1.msra.mxu0 0.0
        %2355 = vmatprep.subr.mxu0 0.0
        %2356 = vmatpush1.msra.mxu0 0.0
        %2357 = vmatprep.subr.mxu0 0.0
        %2358 = vmatpush1.msra.mxu0 0.0
        %2359 = vmatprep.subr.mxu0 0.0
        %2360 = vmatpush1.msra.mxu0 0.0
        %2361 = vmatprep.subr.mxu0 0.0
        %2362 = vmatpush1.msra.mxu0 0.0
        %2363 = vmatprep.subr.mxu0 0.0
        %2364 = vmatpush1.msra.mxu0 0.0
        %2365 = vmatprep.subr.mxu0 0.0
        %2366 = vmatpush1.msra.mxu0 0.0
        %2367 = vmatprep.subr.mxu0 0.0
        %2368 = vmatpush1.msra.mxu0 0.0
        %2369 = vmatprep.subr.mxu0 0.0
        %2370 = vmatpush1.msra.mxu0 0.0
        %2371 = vmatprep.subr.mxu0 0.0
        %2372 = vmatpush1.msra.mxu0 0.0
        %2373 = vmatprep.subr.mxu0 0.0
        %2374 = vmatpush1.msra.mxu0 0.0
        %2375 = vmatprep.subr.mxu0 0.0
        %2376 = vmatpush1.msra.mxu0 0.0
        %2377 = vmatprep.subr.mxu0 0.0
        %2378 = vmatpush1.msra.mxu0 0.0
        %2379 = vmatprep.subr.mxu0 0.0
        %2380 = vmatpush1.msra.mxu0 0.0
        %2381 = vmatprep.subr.mxu0 0.0
        %2382 = vmatpush1.msra.mxu0 0.0
        %2383 = vmatprep.subr.mxu0 0.0
        %2384 = vmatpush1.msra.mxu0 0.0
        %2385 = vmatprep.mubr.f32.mxu0 0.0
        %2386 = vmatmul.mubr.f32.gmra.mrb[0].mxu0 %v2235
        %v2387 = vpop.f32.mrb[0].mxu0
        %v2388 = vadd.f32 %v2231, %v2387
        %v2389 = vpop.f32.mrb[0].mxu0
        %v2390 = vadd.f32 %v2231, %v2389
        %2391 = vdwg.mxu0
        %2392 = vst [vmem:[%s214] sm:$0xff] %v2317
        %2393 = vst [vmem:[%s214 + $0x8] sm:$0xff] %v2319
        %2394 = vst [vmem:[%s214 + $0x10] sm:$0xff] %v2388
        %2395 = vst [vmem:[%s214 + $0x18] sm:$0xff] %v2390
        %s2396 = sand.u32 %s122, 1
        %s2397 = scalar_lea.sflag [#allocation8], %s2396
        %s2398 = sand.u32 %s122, 1
        %s2399 = smul.addr %s2398, 32
        %s2400 = scalar_lea.vmem [#allocation9], %s2399
        // Predicated region
        $region37: #{tpu_custom_call.1} parent=31 // pred_check
          %p2401 = pneg %p132
        $region38: #{tpu_custom_call.1} parent=31 // pred_check_branch
          %2403 = sbr.rel (%p2401) target = $region40
        $region39: #{tpu_custom_call.1} parent=31 // pred_region
          %s2404 = smul.u32 4, %s37
          %s2406 = ssub.s32 512, 512
          %2407 = vsyncadd %s2397, %s2406
          %s2408 = smul.addr %s36, 8
          %s2409 = sadd.s32 %s2404, %s2408
          %s2410 = smul.addr %s2409, 128
          %s2411 = scalar_lea.hbm %s5, %s2410
          %s2413 = sshll.u32 %s2400, 4
          %s2414 = int_to_ptr.vmem [resolvable:$true] %s2413
          %2416 = dma.vmem_to_hbm [thread:$0]  %s2414, 512, %s2411, %s2397
        $region40: #{tpu_custom_call.1} parent=31 // pred_fallthru
          _
      $region32: #{tpu_custom_call.1} parent=5 // pred_fallthru
        _
      %p2417 = scmp.le.s32.totalorder 2, %s27
      // Predicated region
      $region41: #{tpu_custom_call.1} parent=5 // pred_check
        %p2418 = pneg %p2417
      $region42: #{tpu_custom_call.1} parent=5 // pred_check_branch
        %2420 = sbr.rel (%p2418) target = $region44
      $region43: #{tpu_custom_call.1} parent=5 // pred_region
        %s2421 = ssub.s32 %s27, 2
        // Predicated region
        $region45: #{tpu_custom_call.1} parent=43 // pred_check
          %p2422 = pneg %p138
        $region46: #{tpu_custom_call.1} parent=43 // pred_check_branch
          %2424 = sbr.rel (%p2422) target = $region48
        $region47: #{tpu_custom_call.1} parent=43 // pred_region
          %s2425 = sand.u32 %s123, 1
          %s2426 = scalar_lea.sflag [#allocation8], %s2425
          %s2427 = sand.u32 %s123, 1
          %s2428 = smul.addr %s2427, 32
          %s2429 = scalar_lea.vmem [#allocation9], %s2428
          %2430 = dma.done %s2426, 512
        $region48: #{tpu_custom_call.1} parent=43 // pred_fallthru
          _
      $region44: #{tpu_custom_call.1} parent=5 // pred_fallthru
        _
    $region6: #{tpu_custom_call.1} parent=1 // loop_footer
      %s31 = sadd.s32 1, %s27
    $region7: #{tpu_custom_call.1} parent=1 // loop_footer_branch
      %26 = sbr.rel target = $region3
    $region8: #{tpu_custom_call.1} parent=1 // loop_exit
      _
    %2431 = vsyncpa [#allocation7], 1
    %s2432 = scalar_lea.sflag [#allocation7], 1
    %2433 = vsyncpa %s2432, 1
    %2434 = vsyncpa [#allocation8], 1
    %s2435 = scalar_lea.sflag [#allocation8], 1
    %2436 = vsyncpa %s2435, 1

</llo_original>
